<compile_context>
chip_gen: v7x
topology: tpu7x:2x2x1
jax: 0.10.0
libtpu: 0.0.40
codegen_flags: <defaults>
</compile_context>

<pallas_src>
import functools

import numpy as np
import jax
import jax.numpy as jnp
from jax.experimental import pallas as pl
from jax.experimental.pallas import tpu as pltpu

EPS = 1e-5  # PyTorch InstanceNorm3d default eps, affine=False, biased variance


def _convblock3d_kernel(x_ref, w_ref, m_ref, o_ref, col_ref, *, C, G, S, W, HW):
    # x_ref  : (1, C, S)   one sample, spatial flattened on the lane axis
    # w_ref  : (G, 27*C)   conv weights, column index = (kd*9+kh*3+kw)*C + c
    # m_ref  : (27, S)     0/1 zero-padding boundary masks per tap
    # o_ref  : (1, G, S)   output (NCDHW-flat), lane-dense store
    # col_ref: (27*C, S)   VMEM im2col slab in the matmul dtype
    x = x_ref[0].astype(jnp.float32)                      # (C, S)

    # InstanceNorm3d statistics: single fused pass (sum + sum-of-squares),
    # biased variance, rsqrt on the EUP slot.
    inv_s = jnp.float32(1.0 / S)
    s1 = jnp.sum(x, axis=1, keepdims=True)                # (C, 1)
    s2 = jnp.sum(x * x, axis=1, keepdims=True)            # (C, 1)
    mean = s1 * inv_s
    var = s2 * inv_s - mean * mean
    rstd = jax.lax.rsqrt(var + EPS)

    # Normalize + ReLU in f32, then drop to the matmul (input) dtype.
    y = jnp.maximum((x - mean) * rstd, 0.0).astype(col_ref.dtype)   # (C, S)

    # im2col: 27 lane-rolled, boundary-masked copies of y written at static
    # sublane offsets (full lane width -> no masked-lane stores).
    for kd in range(3):
        for kh in range(3):
            for kw in range(3):
                k = kd * 9 + kh * 3 + kw
                off = (kd - 1) * HW + (kh - 1) * W + (kw - 1)
                if off == 0:
                    # center tap: no shift, mask is all ones
                    col_ref[k * C:(k + 1) * C, :] = y
                else:
                    shifted = pltpu.roll(y, shift=(-off) % S, axis=1)   # XLU
                    col_ref[k * C:(k + 1) * C, :] = shifted * m_ref[k:k + 1, :]

    # One fused MXU matmul: (G, 27*C) @ (27*C, S) -> (G, S), f32 accumulate.
    acc = jnp.dot(w_ref[...], col_ref[...], preferred_element_type=jnp.float32)
    o_ref[0] = acc.astype(o_ref.dtype)


def conv_block_3d(x_ncdhw, weight_gc333):
    """x_ncdhw: (N, C, D, H, W); weight: (G, C, 3, 3, 3). Returns (N, G, D, H, W)."""
    N, C, D, H, W = x_ncdhw.shape
    G = weight_gc333.shape[0]
    S = D * H * W
    HW = H * W

    cdt = x_ncdhw.dtype  # matmul operand dtype (bf16 inputs stay bf16, f32 stays f32)

    # NCDHW -> (N, C, S): pure reshape, spatial lands on the lane axis.
    x = x_ncdhw.reshape(N, C, S)

    # (G, C, 3, 3, 3) -> (G, 27*C) with column index (kd*9+kh*3+kw)*C + c.
    w = jnp.transpose(weight_gc333, (0, 2, 3, 4, 1)).reshape(G, 27 * C).astype(cdt)

    # Precompute the 27 zero-padding boundary masks (0/1) over flattened space.
    dd, hh, ww = np.meshgrid(np.arange(D), np.arange(H), np.arange(W), indexing="ij")
    dd, hh, ww = dd.reshape(-1), hh.reshape(-1), ww.reshape(-1)
    masks = np.zeros((27, S), np.float32)
    for kd in range(3):
        for kh in range(3):
            for kw in range(3):
                valid = ((dd + kd - 1 >= 0) & (dd + kd - 1 < D) &
                         (hh + kh - 1 >= 0) & (hh + kh - 1 < H) &
                         (ww + kw - 1 >= 0) & (ww + kw - 1 < W))
                masks[kd * 9 + kh * 3 + kw] = valid
    masks = jnp.asarray(masks, cdt)

    kern = functools.partial(_convblock3d_kernel, C=C, G=G, S=S, W=W, HW=HW)

    # TODO(synk): for production-size volumes (e.g. 64^3, C>=32) add a D-tile grid
    # axis with a 1-plane halo plus a separate stats pass so per-step VMEM stays
    # within v7x's 64 MiB and both TensorCores get work even when N is small/odd.
    out = pl.pallas_call(
        kern,
        out_shape=jax.ShapeDtypeStruct((N, G, S), x_ncdhw.dtype),
        grid_spec=pltpu.PrefetchScalarGridSpec(
            num_scalar_prefetch=0,
            grid=(N,),
            in_specs=[
                pl.BlockSpec((1, C, S), lambda n: (n, 0, 0)),
                pl.BlockSpec((G, 27 * C), lambda n: (0, 0)),
                pl.BlockSpec((27, S), lambda n: (0, 0)),
            ],
            out_specs=pl.BlockSpec((1, G, S), lambda n: (n, 0, 0)),
            scratch_shapes=[pltpu.VMEM((27 * C, S), cdt)],
        ),
        compiler_params=pltpu.CompilerParams(
            dimension_semantics=("parallel",),
            vmem_limit_bytes=32 * 1024 * 1024,
        ),
    )(x, w, masks)

    return out.reshape(N, G, D, H, W)


def _reference(x_ncdhw, weight_gc333):
    """Pure-JAX reference of the PyTorch forward (for correctness check)."""
    mean = jnp.mean(x_ncdhw, axis=(2, 3, 4), keepdims=True)
    var = jnp.mean((x_ncdhw - mean) ** 2, axis=(2, 3, 4), keepdims=True)
    y = jnp.maximum((x_ncdhw - mean) * jax.lax.rsqrt(var + EPS), 0.0)
    return jax.lax.conv_general_dilated(
        y, weight_gc333,
        window_strides=(1, 1, 1),
        padding=((1, 1), (1, 1), (1, 1)),
        dimension_numbers=("NCDHW", "OIDHW", "NCDHW"),
        precision=jax.lax.Precision.HIGHEST,
    )


if __name__ == "__main__":
    key = jax.random.PRNGKey(0)
    kx, kw = jax.random.split(key)

    # small shapes consistent with the module: batch=2, in_channels=4,
    # growth_rate=8, spatial 8x8x8 (S = 512, a multiple of 128)
    N, C, D, H, W, G = 2, 4, 8, 8, 8, 8
    x = jax.random.normal(kx, (N, C, D, H, W), jnp.float32)

    # deterministic synthetic Conv3d weight (PyTorch-style uniform bound), no bias
    fan_in = C * 3 * 3 * 3
    bound = (1.0 / fan_in) ** 0.5
    weight = jax.random.uniform(kw, (G, C, 3, 3, 3), jnp.float32, -bound, bound)

    out = conv_block_3d(x, weight)
    out = jax.block_until_ready(out)
    assert out.shape == (N, G, D, H, W), out.shape

    ref = _reference(x, weight)
    max_err = float(jnp.max(jnp.abs(out - ref)))
    if max_err > 3e-3:
        raise AssertionError(f"kernel/reference mismatch: max abs err = {max_err}")

    print("KERNEL_OK")
</pallas_src>

<mosaic_0001>
module attributes {stable_mosaic.version = 11 : i64} {
  func.func @_convblock3d_kernel(%arg0: i32, %arg1: memref<1x4x512xf32, #tpu.memory_space<vmem>>, %arg2: memref<8x108xf32, #tpu.memory_space<vmem>>, %arg3: memref<27x512xf32, #tpu.memory_space<vmem>>, %arg4: memref<1x8x512xf32, #tpu.memory_space<vmem>>, %arg5: memref<108x512xf32, #tpu.memory_space<vmem>>) attributes {dimension_semantics = [#tpu.dimension_semantics<parallel>], iteration_bounds = array<i64: 2>, scalar_prefetch = 0 : i64, scratch_operands = 1 : i64, tpu.core_type = #tpu.core_type<tc>, window_params = [{transform_indices = @transform_0, window_bounds = array<i64: 1, 4, 512>}, {pipeline_mode = #tpu.pipeline_mode<synchronous>, transform_indices = @transform_1, window_bounds = array<i64: 8, 108>}, {pipeline_mode = #tpu.pipeline_mode<synchronous>, transform_indices = @transform_2, window_bounds = array<i64: 27, 512>}, {transform_indices = @transform_3, window_bounds = array<i64: 1, 8, 512>}]} {
    %c0 = arith.constant 0 : index
    %c0_0 = arith.constant 0 : index
    %c0_1 = arith.constant 0 : index
    %0 = vector.load %arg1[%c0, %c0_0, %c0_1] : memref<1x4x512xf32, #tpu.memory_space<vmem>>, vector<1x4x512xf32>
    %1 = vector.shape_cast %0 : vector<1x4x512xf32> to vector<4x512xf32>
    %cst = arith.constant dense<0.000000e+00> : vector<4xf32>
    %2 = vector.multi_reduction <add>, %1, %cst [1] : vector<4x512xf32> to vector<4xf32>
    %3 = vector.shape_cast %2 : vector<4xf32> to vector<4x1xf32>
    %4 = arith.mulf %1, %1 : vector<4x512xf32>
    %cst_2 = arith.constant dense<0.000000e+00> : vector<4xf32>
    %5 = vector.multi_reduction <add>, %4, %cst_2 [1] : vector<4x512xf32> to vector<4xf32>
    %6 = vector.shape_cast %5 : vector<4xf32> to vector<4x1xf32>
    %cst_3 = arith.constant 0.001953125 : f32
    %7 = vector.broadcast %cst_3 : f32 to vector<4x1xf32>
    %8 = arith.mulf %3, %7 : vector<4x1xf32>
    %cst_4 = arith.constant 0.001953125 : f32
    %9 = vector.broadcast %cst_4 : f32 to vector<4x1xf32>
    %10 = arith.mulf %6, %9 : vector<4x1xf32>
    %11 = arith.mulf %8, %8 : vector<4x1xf32>
    %12 = arith.subf %10, %11 : vector<4x1xf32>
    %cst_5 = arith.constant 9.99999974E-6 : f32
    %13 = vector.broadcast %cst_5 : f32 to vector<4x1xf32>
    %14 = arith.addf %12, %13 : vector<4x1xf32>
    %15 = math.rsqrt %14 : vector<4x1xf32>
    %16 = vector.broadcast %8 : vector<4x1xf32> to vector<4x512xf32>
    %17 = arith.subf %1, %16 : vector<4x512xf32>
    %18 = vector.broadcast %15 : vector<4x1xf32> to vector<4x512xf32>
    %19 = arith.mulf %17, %18 : vector<4x512xf32>
    %cst_6 = arith.constant 0.000000e+00 : f32
    %20 = vector.broadcast %cst_6 : f32 to vector<4x512xf32>
    %21 = arith.maximumf %19, %20 : vector<4x512xf32>
    %c73_i32 = arith.constant 73 : i32
    %22 = tpu.dynamic_rotate %21 by %c73_i32 dim 1 : vector<4x512xf32>, i32 -> vector<4x512xf32>
    %c0_7 = arith.constant 0 : index
    %c0_8 = arith.constant 0 : index
    %23 = vector.load %arg3[%c0_7, %c0_8] : memref<27x512xf32, #tpu.memory_space<vmem>>, vector<1x512xf32>
    %24 = vector.broadcast %23 : vector<1x512xf32> to vector<4x512xf32>
    %25 = arith.mulf %22, %24 : vector<4x512xf32>
    %c0_9 = arith.constant 0 : index
    %c0_10 = arith.constant 0 : index
    %26 = vector.load %arg5[%c0_9, %c0_10] : memref<108x512xf32, #tpu.memory_space<vmem>>, vector<4x512xf32>
    tpu.vector_store %arg5[%c0_9, %c0_10], %25 {strides = array<i32>} : memref<108x512xf32, #tpu.memory_space<vmem>>, vector<4x512xf32>,
    %c72_i32 = arith.constant 72 : i32
    %27 = tpu.dynamic_rotate %21 by %c72_i32 dim 1 : vector<4x512xf32>, i32 -> vector<4x512xf32>
    %c1 = arith.constant 1 : index
    %c0_11 = arith.constant 0 : index
    %28 = vector.load %arg3[%c1, %c0_11] : memref<27x512xf32, #tpu.memory_space<vmem>>, vector<1x512xf32>
    %29 = vector.broadcast %28 : vector<1x512xf32> to vector<4x512xf32>
    %30 = arith.mulf %27, %29 : vector<4x512xf32>
    %c4 = arith.constant 4 : index
    %c0_12 = arith.constant 0 : index
    %31 = vector.load %arg5[%c4, %c0_12] : memref<108x512xf32, #tpu.memory_space<vmem>>, vector<4x512xf32>
    tpu.vector_store %arg5[%c4, %c0_12], %30 {strides = array<i32>} : memref<108x512xf32, #tpu.memory_space<vmem>>, vector<4x512xf32>,
    %c71_i32 = arith.constant 71 : i32
    %32 = tpu.dynamic_rotate %21 by %c71_i32 dim 1 : vector<4x512xf32>, i32 -> vector<4x512xf32>
    %c2 = arith.constant 2 : index
    %c0_13 = arith.constant 0 : index
    %33 = vector.load %arg3[%c2, %c0_13] : memref<27x512xf32, #tpu.memory_space<vmem>>, vector<1x512xf32>
    %34 = vector.broadcast %33 : vector<1x512xf32> to vector<4x512xf32>
    %35 = arith.mulf %32, %34 : vector<4x512xf32>
    %c8 = arith.constant 8 : index
    %c0_14 = arith.constant 0 : index
    %36 = vector.load %arg5[%c8, %c0_14] : memref<108x512xf32, #tpu.memory_space<vmem>>, vector<4x512xf32>
    tpu.vector_store %arg5[%c8, %c0_14], %35 {strides = array<i32>} : memref<108x512xf32, #tpu.memory_space<vmem>>, vector<4x512xf32>,
    %c65_i32 = arith.constant 65 : i32
    %37 = tpu.dynamic_rotate %21 by %c65_i32 dim 1 : vector<4x512xf32>, i32 -> vector<4x512xf32>
    %c3 = arith.constant 3 : index
    %c0_15 = arith.constant 0 : index
    %38 = vector.load %arg3[%c3, %c0_15] : memref<27x512xf32, #tpu.memory_space<vmem>>, vector<1x512xf32>
    %39 = vector.broadcast %38 : vector<1x512xf32> to vector<4x512xf32>
    %40 = arith.mulf %37, %39 : vector<4x512xf32>
    %c12 = arith.constant 12 : index
    %c0_16 = arith.constant 0 : index
    %41 = vector.load %arg5[%c12, %c0_16] : memref<108x512xf32, #tpu.memory_space<vmem>>, vector<4x512xf32>
    tpu.vector_store %arg5[%c12, %c0_16], %40 {strides = array<i32>} : memref<108x512xf32, #tpu.memory_space<vmem>>, vector<4x512xf32>,
    %c64_i32 = arith.constant 64 : i32
    %42 = tpu.dynamic_rotate %21 by %c64_i32 dim 1 : vector<4x512xf32>, i32 -> vector<4x512xf32>
    %c4_17 = arith.constant 4 : index
    %c0_18 = arith.constant 0 : index
    %43 = vector.load %arg3[%c4_17, %c0_18] : memref<27x512xf32, #tpu.memory_space<vmem>>, vector<1x512xf32>
    %44 = vector.broadcast %43 : vector<1x512xf32> to vector<4x512xf32>
    %45 = arith.mulf %42, %44 : vector<4x512xf32>
    %c16 = arith.constant 16 : index
    %c0_19 = arith.constant 0 : index
    %46 = vector.load %arg5[%c16, %c0_19] : memref<108x512xf32, #tpu.memory_space<vmem>>, vector<4x512xf32>
    tpu.vector_store %arg5[%c16, %c0_19], %45 {strides = array<i32>} : memref<108x512xf32, #tpu.memory_space<vmem>>, vector<4x512xf32>,
    %c63_i32 = arith.constant 63 : i32
    %47 = tpu.dynamic_rotate %21 by %c63_i32 dim 1 : vector<4x512xf32>, i32 -> vector<4x512xf32>
    %c5 = arith.constant 5 : index
    %c0_20 = arith.constant 0 : index
    %48 = vector.load %arg3[%c5, %c0_20] : memref<27x512xf32, #tpu.memory_space<vmem>>, vector<1x512xf32>
    %49 = vector.broadcast %48 : vector<1x512xf32> to vector<4x512xf32>
    %50 = arith.mulf %47, %49 : vector<4x512xf32>
    %c20 = arith.constant 20 : index
    %c0_21 = arith.constant 0 : index
    %51 = vector.load %arg5[%c20, %c0_21] : memref<108x512xf32, #tpu.memory_space<vmem>>, vector<4x512xf32>
    tpu.vector_store %arg5[%c20, %c0_21], %50 {strides = array<i32>} : memref<108x512xf32, #tpu.memory_space<vmem>>, vector<4x512xf32>,
    %c57_i32 = arith.constant 57 : i32
    %52 = tpu.dynamic_rotate %21 by %c57_i32 dim 1 : vector<4x512xf32>, i32 -> vector<4x512xf32>
    %c6 = arith.constant 6 : index
    %c0_22 = arith.constant 0 : index
    %53 = vector.load %arg3[%c6, %c0_22] : memref<27x512xf32, #tpu.memory_space<vmem>>, vector<1x512xf32>
    %54 = vector.broadcast %53 : vector<1x512xf32> to vector<4x512xf32>
    %55 = arith.mulf %52, %54 : vector<4x512xf32>
    %c24 = arith.constant 24 : index
    %c0_23 = arith.constant 0 : index
    %56 = vector.load %arg5[%c24, %c0_23] : memref<108x512xf32, #tpu.memory_space<vmem>>, vector<4x512xf32>
    tpu.vector_store %arg5[%c24, %c0_23], %55 {strides = array<i32>} : memref<108x512xf32, #tpu.memory_space<vmem>>, vector<4x512xf32>,
    %c56_i32 = arith.constant 56 : i32
    %57 = tpu.dynamic_rotate %21 by %c56_i32 dim 1 : vector<4x512xf32>, i32 -> vector<4x512xf32>
    %c7 = arith.constant 7 : index
    %c0_24 = arith.constant 0 : index
    %58 = vector.load %arg3[%c7, %c0_24] : memref<27x512xf32, #tpu.memory_space<vmem>>, vector<1x512xf32>
    %59 = vector.broadcast %58 : vector<1x512xf32> to vector<4x512xf32>
    %60 = arith.mulf %57, %59 : vector<4x512xf32>
    %c28 = arith.constant 28 : index
    %c0_25 = arith.constant 0 : index
    %61 = vector.load %arg5[%c28, %c0_25] : memref<108x512xf32, #tpu.memory_space<vmem>>, vector<4x512xf32>
    tpu.vector_store %arg5[%c28, %c0_25], %60 {strides = array<i32>} : memref<108x512xf32, #tpu.memory_space<vmem>>, vector<4x512xf32>,
    %c55_i32 = arith.constant 55 : i32
    %62 = tpu.dynamic_rotate %21 by %c55_i32 dim 1 : vector<4x512xf32>, i32 -> vector<4x512xf32>
    %c8_26 = arith.constant 8 : index
    %c0_27 = arith.constant 0 : index
    %63 = vector.load %arg3[%c8_26, %c0_27] : memref<27x512xf32, #tpu.memory_space<vmem>>, vector<1x512xf32>
    %64 = vector.broadcast %63 : vector<1x512xf32> to vector<4x512xf32>
    %65 = arith.mulf %62, %64 : vector<4x512xf32>
    %c32 = arith.constant 32 : index
    %c0_28 = arith.constant 0 : index
    %66 = vector.load %arg5[%c32, %c0_28] : memref<108x512xf32, #tpu.memory_space<vmem>>, vector<4x512xf32>
    tpu.vector_store %arg5[%c32, %c0_28], %65 {strides = array<i32>} : memref<108x512xf32, #tpu.memory_space<vmem>>, vector<4x512xf32>,
    %c9_i32 = arith.constant 9 : i32
    %67 = tpu.dynamic_rotate %21 by %c9_i32 dim 1 : vector<4x512xf32>, i32 -> vector<4x512xf32>
    %c9 = arith.constant 9 : index
    %c0_29 = arith.constant 0 : index
    %68 = vector.load %arg3[%c9, %c0_29] : memref<27x512xf32, #tpu.memory_space<vmem>>, vector<1x512xf32>
    %69 = vector.broadcast %68 : vector<1x512xf32> to vector<4x512xf32>
    %70 = arith.mulf %67, %69 : vector<4x512xf32>
    %c36 = arith.constant 36 : index
    %c0_30 = arith.constant 0 : index
    %71 = vector.load %arg5[%c36, %c0_30] : memref<108x512xf32, #tpu.memory_space<vmem>>, vector<4x512xf32>
    tpu.vector_store %arg5[%c36, %c0_30], %70 {strides = array<i32>} : memref<108x512xf32, #tpu.memory_space<vmem>>, vector<4x512xf32>,
    %c8_i32 = arith.constant 8 : i32
    %72 = tpu.dynamic_rotate %21 by %c8_i32 dim 1 : vector<4x512xf32>, i32 -> vector<4x512xf32>
    %c10 = arith.constant 10 : index
    %c0_31 = arith.constant 0 : index
    %73 = vector.load %arg3[%c10, %c0_31] : memref<27x512xf32, #tpu.memory_space<vmem>>, vector<1x512xf32>
    %74 = vector.broadcast %73 : vector<1x512xf32> to vector<4x512xf32>
    %75 = arith.mulf %72, %74 : vector<4x512xf32>
    %c40 = arith.constant 40 : index
    %c0_32 = arith.constant 0 : index
    %76 = vector.load %arg5[%c40, %c0_32] : memref<108x512xf32, #tpu.memory_space<vmem>>, vector<4x512xf32>
    tpu.vector_store %arg5[%c40, %c0_32], %75 {strides = array<i32>} : memref<108x512xf32, #tpu.memory_space<vmem>>, vector<4x512xf32>,
    %c7_i32 = arith.constant 7 : i32
    %77 = tpu.dynamic_rotate %21 by %c7_i32 dim 1 : vector<4x512xf32>, i32 -> vector<4x512xf32>
    %c11 = arith.constant 11 : index
    %c0_33 = arith.constant 0 : index
    %78 = vector.load %arg3[%c11, %c0_33] : memref<27x512xf32, #tpu.memory_space<vmem>>, vector<1x512xf32>
    %79 = vector.broadcast %78 : vector<1x512xf32> to vector<4x512xf32>
    %80 = arith.mulf %77, %79 : vector<4x512xf32>
    %c44 = arith.constant 44 : index
    %c0_34 = arith.constant 0 : index
    %81 = vector.load %arg5[%c44, %c0_34] : memref<108x512xf32, #tpu.memory_space<vmem>>, vector<4x512xf32>
    tpu.vector_store %arg5[%c44, %c0_34], %80 {strides = array<i32>} : memref<108x512xf32, #tpu.memory_space<vmem>>, vector<4x512xf32>,
    %c1_i32 = arith.constant 1 : i32
    %82 = tpu.dynamic_rotate %21 by %c1_i32 dim 1 : vector<4x512xf32>, i32 -> vector<4x512xf32>
    %c12_35 = arith.constant 12 : index
    %c0_36 = arith.constant 0 : index
    %83 = vector.load %arg3[%c12_35, %c0_36] : memref<27x512xf32, #tpu.memory_space<vmem>>, vector<1x512xf32>
    %84 = vector.broadcast %83 : vector<1x512xf32> to vector<4x512xf32>
    %85 = arith.mulf %82, %84 : vector<4x512xf32>
    %c48 = arith.constant 48 : index
    %c0_37 = arith.constant 0 : index
    %86 = vector.load %arg5[%c48, %c0_37] : memref<108x512xf32, #tpu.memory_space<vmem>>, vector<4x512xf32>
    tpu.vector_store %arg5[%c48, %c0_37], %85 {strides = array<i32>} : memref<108x512xf32, #tpu.memory_space<vmem>>, vector<4x512xf32>,
    %c52 = arith.constant 52 : index
    %c0_38 = arith.constant 0 : index
    %87 = vector.load %arg5[%c52, %c0_38] : memref<108x512xf32, #tpu.memory_space<vmem>>, vector<4x512xf32>
    tpu.vector_store %arg5[%c52, %c0_38], %21 {strides = array<i32>} : memref<108x512xf32, #tpu.memory_space<vmem>>, vector<4x512xf32>,
    %c511_i32 = arith.constant 511 : i32
    %88 = tpu.dynamic_rotate %21 by %c511_i32 dim 1 : vector<4x512xf32>, i32 -> vector<4x512xf32>
    %c14 = arith.constant 14 : index
    %c0_39 = arith.constant 0 : index
    %89 = vector.load %arg3[%c14, %c0_39] : memref<27x512xf32, #tpu.memory_space<vmem>>, vector<1x512xf32>
    %90 = vector.broadcast %89 : vector<1x512xf32> to vector<4x512xf32>
    %91 = arith.mulf %88, %90 : vector<4x512xf32>
    %c56 = arith.constant 56 : index
    %c0_40 = arith.constant 0 : index
    %92 = vector.load %arg5[%c56, %c0_40] : memref<108x512xf32, #tpu.memory_space<vmem>>, vector<4x512xf32>
    tpu.vector_store %arg5[%c56, %c0_40], %91 {strides = array<i32>} : memref<108x512xf32, #tpu.memory_space<vmem>>, vector<4x512xf32>,
    %c505_i32 = arith.constant 505 : i32
    %93 = tpu.dynamic_rotate %21 by %c505_i32 dim 1 : vector<4x512xf32>, i32 -> vector<4x512xf32>
    %c15 = arith.constant 15 : index
    %c0_41 = arith.constant 0 : index
    %94 = vector.load %arg3[%c15, %c0_41] : memref<27x512xf32, #tpu.memory_space<vmem>>, vector<1x512xf32>
    %95 = vector.broadcast %94 : vector<1x512xf32> to vector<4x512xf32>
    %96 = arith.mulf %93, %95 : vector<4x512xf32>
    %c60 = arith.constant 60 : index
    %c0_42 = arith.constant 0 : index
    %97 = vector.load %arg5[%c60, %c0_42] : memref<108x512xf32, #tpu.memory_space<vmem>>, vector<4x512xf32>
    tpu.vector_store %arg5[%c60, %c0_42], %96 {strides = array<i32>} : memref<108x512xf32, #tpu.memory_space<vmem>>, vector<4x512xf32>,
    %c504_i32 = arith.constant 504 : i32
    %98 = tpu.dynamic_rotate %21 by %c504_i32 dim 1 : vector<4x512xf32>, i32 -> vector<4x512xf32>
    %c16_43 = arith.constant 16 : index
    %c0_44 = arith.constant 0 : index
    %99 = vector.load %arg3[%c16_43, %c0_44] : memref<27x512xf32, #tpu.memory_space<vmem>>, vector<1x512xf32>
    %100 = vector.broadcast %99 : vector<1x512xf32> to vector<4x512xf32>
    %101 = arith.mulf %98, %100 : vector<4x512xf32>
    %c64 = arith.constant 64 : index
    %c0_45 = arith.constant 0 : index
    %102 = vector.load %arg5[%c64, %c0_45] : memref<108x512xf32, #tpu.memory_space<vmem>>, vector<4x512xf32>
    tpu.vector_store %arg5[%c64, %c0_45], %101 {strides = array<i32>} : memref<108x512xf32, #tpu.memory_space<vmem>>, vector<4x512xf32>,
    %c503_i32 = arith.constant 503 : i32
    %103 = tpu.dynamic_rotate %21 by %c503_i32 dim 1 : vector<4x512xf32>, i32 -> vector<4x512xf32>
    %c17 = arith.constant 17 : index
    %c0_46 = arith.constant 0 : index
    %104 = vector.load %arg3[%c17, %c0_46] : memref<27x512xf32, #tpu.memory_space<vmem>>, vector<1x512xf32>
    %105 = vector.broadcast %104 : vector<1x512xf32> to vector<4x512xf32>
    %106 = arith.mulf %103, %105 : vector<4x512xf32>
    %c68 = arith.constant 68 : index
    %c0_47 = arith.constant 0 : index
    %107 = vector.load %arg5[%c68, %c0_47] : memref<108x512xf32, #tpu.memory_space<vmem>>, vector<4x512xf32>
    tpu.vector_store %arg5[%c68, %c0_47], %106 {strides = array<i32>} : memref<108x512xf32, #tpu.memory_space<vmem>>, vector<4x512xf32>,
    %c457_i32 = arith.constant 457 : i32
    %108 = tpu.dynamic_rotate %21 by %c457_i32 dim 1 : vector<4x512xf32>, i32 -> vector<4x512xf32>
    %c18 = arith.constant 18 : index
    %c0_48 = arith.constant 0 : index
    %109 = vector.load %arg3[%c18, %c0_48] : memref<27x512xf32, #tpu.memory_space<vmem>>, vector<1x512xf32>
    %110 = vector.broadcast %109 : vector<1x512xf32> to vector<4x512xf32>
    %111 = arith.mulf %108, %110 : vector<4x512xf32>
    %c72 = arith.constant 72 : index
    %c0_49 = arith.constant 0 : index
    %112 = vector.load %arg5[%c72, %c0_49] : memref<108x512xf32, #tpu.memory_space<vmem>>, vector<4x512xf32>
    tpu.vector_store %arg5[%c72, %c0_49], %111 {strides = array<i32>} : memref<108x512xf32, #tpu.memory_space<vmem>>, vector<4x512xf32>,
    %c456_i32 = arith.constant 456 : i32
    %113 = tpu.dynamic_rotate %21 by %c456_i32 dim 1 : vector<4x512xf32>, i32 -> vector<4x512xf32>
    %c19 = arith.constant 19 : index
    %c0_50 = arith.constant 0 : index
    %114 = vector.load %arg3[%c19, %c0_50] : memref<27x512xf32, #tpu.memory_space<vmem>>, vector<1x512xf32>
    %115 = vector.broadcast %114 : vector<1x512xf32> to vector<4x512xf32>
    %116 = arith.mulf %113, %115 : vector<4x512xf32>
    %c76 = arith.constant 76 : index
    %c0_51 = arith.constant 0 : index
    %117 = vector.load %arg5[%c76, %c0_51] : memref<108x512xf32, #tpu.memory_space<vmem>>, vector<4x512xf32>
    tpu.vector_store %arg5[%c76, %c0_51], %116 {strides = array<i32>} : memref<108x512xf32, #tpu.memory_space<vmem>>, vector<4x512xf32>,
    %c455_i32 = arith.constant 455 : i32
    %118 = tpu.dynamic_rotate %21 by %c455_i32 dim 1 : vector<4x512xf32>, i32 -> vector<4x512xf32>
    %c20_52 = arith.constant 20 : index
    %c0_53 = arith.constant 0 : index
    %119 = vector.load %arg3[%c20_52, %c0_53] : memref<27x512xf32, #tpu.memory_space<vmem>>, vector<1x512xf32>
    %120 = vector.broadcast %119 : vector<1x512xf32> to vector<4x512xf32>
    %121 = arith.mulf %118, %120 : vector<4x512xf32>
    %c80 = arith.constant 80 : index
    %c0_54 = arith.constant 0 : index
    %122 = vector.load %arg5[%c80, %c0_54] : memref<108x512xf32, #tpu.memory_space<vmem>>, vector<4x512xf32>
    tpu.vector_store %arg5[%c80, %c0_54], %121 {strides = array<i32>} : memref<108x512xf32, #tpu.memory_space<vmem>>, vector<4x512xf32>,
    %c449_i32 = arith.constant 449 : i32
    %123 = tpu.dynamic_rotate %21 by %c449_i32 dim 1 : vector<4x512xf32>, i32 -> vector<4x512xf32>
    %c21 = arith.constant 21 : index
    %c0_55 = arith.constant 0 : index
    %124 = vector.load %arg3[%c21, %c0_55] : memref<27x512xf32, #tpu.memory_space<vmem>>, vector<1x512xf32>
    %125 = vector.broadcast %124 : vector<1x512xf32> to vector<4x512xf32>
    %126 = arith.mulf %123, %125 : vector<4x512xf32>
    %c84 = arith.constant 84 : index
    %c0_56 = arith.constant 0 : index
    %127 = vector.load %arg5[%c84, %c0_56] : memref<108x512xf32, #tpu.memory_space<vmem>>, vector<4x512xf32>
    tpu.vector_store %arg5[%c84, %c0_56], %126 {strides = array<i32>} : memref<108x512xf32, #tpu.memory_space<vmem>>, vector<4x512xf32>,
    %c448_i32 = arith.constant 448 : i32
    %128 = tpu.dynamic_rotate %21 by %c448_i32 dim 1 : vector<4x512xf32>, i32 -> vector<4x512xf32>
    %c22 = arith.constant 22 : index
    %c0_57 = arith.constant 0 : index
    %129 = vector.load %arg3[%c22, %c0_57] : memref<27x512xf32, #tpu.memory_space<vmem>>, vector<1x512xf32>
    %130 = vector.broadcast %129 : vector<1x512xf32> to vector<4x512xf32>
    %131 = arith.mulf %128, %130 : vector<4x512xf32>
    %c88 = arith.constant 88 : index
    %c0_58 = arith.constant 0 : index
    %132 = vector.load %arg5[%c88, %c0_58] : memref<108x512xf32, #tpu.memory_space<vmem>>, vector<4x512xf32>
    tpu.vector_store %arg5[%c88, %c0_58], %131 {strides = array<i32>} : memref<108x512xf32, #tpu.memory_space<vmem>>, vector<4x512xf32>,
    %c447_i32 = arith.constant 447 : i32
    %133 = tpu.dynamic_rotate %21 by %c447_i32 dim 1 : vector<4x512xf32>, i32 -> vector<4x512xf32>
    %c23 = arith.constant 23 : index
    %c0_59 = arith.constant 0 : index
    %134 = vector.load %arg3[%c23, %c0_59] : memref<27x512xf32, #tpu.memory_space<vmem>>, vector<1x512xf32>
    %135 = vector.broadcast %134 : vector<1x512xf32> to vector<4x512xf32>
    %136 = arith.mulf %133, %135 : vector<4x512xf32>
    %c92 = arith.constant 92 : index
    %c0_60 = arith.constant 0 : index
    %137 = vector.load %arg5[%c92, %c0_60] : memref<108x512xf32, #tpu.memory_space<vmem>>, vector<4x512xf32>
    tpu.vector_store %arg5[%c92, %c0_60], %136 {strides = array<i32>} : memref<108x512xf32, #tpu.memory_space<vmem>>, vector<4x512xf32>,
    %c441_i32 = arith.constant 441 : i32
    %138 = tpu.dynamic_rotate %21 by %c441_i32 dim 1 : vector<4x512xf32>, i32 -> vector<4x512xf32>
    %c24_61 = arith.constant 24 : index
    %c0_62 = arith.constant 0 : index
    %139 = vector.load %arg3[%c24_61, %c0_62] : memref<27x512xf32, #tpu.memory_space<vmem>>, vector<1x512xf32>
    %140 = vector.broadcast %139 : vector<1x512xf32> to vector<4x512xf32>
    %141 = arith.mulf %138, %140 : vector<4x512xf32>
    %c96 = arith.constant 96 : index
    %c0_63 = arith.constant 0 : index
    %142 = vector.load %arg5[%c96, %c0_63] : memref<108x512xf32, #tpu.memory_space<vmem>>, vector<4x512xf32>
    tpu.vector_store %arg5[%c96, %c0_63], %141 {strides = array<i32>} : memref<108x512xf32, #tpu.memory_space<vmem>>, vector<4x512xf32>,
    %c440_i32 = arith.constant 440 : i32
    %143 = tpu.dynamic_rotate %21 by %c440_i32 dim 1 : vector<4x512xf32>, i32 -> vector<4x512xf32>
    %c25 = arith.constant 25 : index
    %c0_64 = arith.constant 0 : index
    %144 = vector.load %arg3[%c25, %c0_64] : memref<27x512xf32, #tpu.memory_space<vmem>>, vector<1x512xf32>
    %145 = vector.broadcast %144 : vector<1x512xf32> to vector<4x512xf32>
    %146 = arith.mulf %143, %145 : vector<4x512xf32>
    %c100 = arith.constant 100 : index
    %c0_65 = arith.constant 0 : index
    %147 = vector.load %arg5[%c100, %c0_65] : memref<108x512xf32, #tpu.memory_space<vmem>>, vector<4x512xf32>
    tpu.vector_store %arg5[%c100, %c0_65], %146 {strides = array<i32>} : memref<108x512xf32, #tpu.memory_space<vmem>>, vector<4x512xf32>,
    %c439_i32 = arith.constant 439 : i32
    %148 = tpu.dynamic_rotate %21 by %c439_i32 dim 1 : vector<4x512xf32>, i32 -> vector<4x512xf32>
    %c26 = arith.constant 26 : index
    %c0_66 = arith.constant 0 : index
    %149 = vector.load %arg3[%c26, %c0_66] : memref<27x512xf32, #tpu.memory_space<vmem>>, vector<1x512xf32>
    %150 = vector.broadcast %149 : vector<1x512xf32> to vector<4x512xf32>
    %151 = arith.mulf %148, %150 : vector<4x512xf32>
    %c104 = arith.constant 104 : index
    %c0_67 = arith.constant 0 : index
    %152 = vector.load %arg5[%c104, %c0_67] : memref<108x512xf32, #tpu.memory_space<vmem>>, vector<4x512xf32>
    tpu.vector_store %arg5[%c104, %c0_67], %151 {strides = array<i32>} : memref<108x512xf32, #tpu.memory_space<vmem>>, vector<4x512xf32>,
    %c0_68 = arith.constant 0 : index
    %c0_69 = arith.constant 0 : index
    %153 = vector.load %arg2[%c0_68, %c0_69] : memref<8x108xf32, #tpu.memory_space<vmem>>, vector<8x108xf32>
    %c0_70 = arith.constant 0 : index
    %c0_71 = arith.constant 0 : index
    %154 = vector.load %arg5[%c0_70, %c0_71] : memref<108x512xf32, #tpu.memory_space<vmem>>, vector<108x512xf32>
    %cst_72 = arith.constant dense<0.000000e+00> : vector<8x512xf32>
    %155 = tpu.matmul %153, %154, %cst_72 {dimension_numbers = #tpu.dot_dimension_numbers<[1], [0], [0], [1], [0, 0, 1, 1], [], []>} : vector<8x108xf32>, vector<108x512xf32>, vector<8x512xf32> -> vector<8x512xf32>
    %c0_73 = arith.constant 0 : index
    %c0_74 = arith.constant 0 : index
    %c0_75 = arith.constant 0 : index
    %156 = vector.load %arg4[%c0_73, %c0_74, %c0_75] : memref<1x8x512xf32, #tpu.memory_space<vmem>>, vector<1x8x512xf32>
    %157 = vector.shape_cast %156 : vector<1x8x512xf32> to vector<8x512xf32>
    %158 = vector.shape_cast %155 : vector<8x512xf32> to vector<1x8x512xf32>
    tpu.vector_store %arg4[%c0_73, %c0_74, %c0_75], %158 {strides = array<i32>} : memref<1x8x512xf32, #tpu.memory_space<vmem>>, vector<1x8x512xf32>,
    return
  }
  func.func @transform_0(%arg0: i32) -> (i32, i32, i32) {
    %c0_i32 = arith.constant 0 : i32
    %c0_i32_0 = arith.constant 0 : i32
    %c0_i32_1 = arith.constant 0 : i32
    return %arg0, %c0_i32, %c0_i32_0 : i32, i32, i32
  }
  func.func @transform_1(%arg0: i32) -> (i32, i32) {
    %c0_i32 = arith.constant 0 : i32
    %c0_i32_0 = arith.constant 0 : i32
    %c0_i32_1 = arith.constant 0 : i32
    return %c0_i32, %c0_i32_0 : i32, i32
  }
  func.func @transform_2(%arg0: i32) -> (i32, i32) {
    %c0_i32 = arith.constant 0 : i32
    %c0_i32_0 = arith.constant 0 : i32
    %c0_i32_1 = arith.constant 0 : i32
    return %c0_i32, %c0_i32_0 : i32, i32
  }
  func.func @transform_3(%arg0: i32) -> (i32, i32, i32) {
    %c0_i32 = arith.constant 0 : i32
    %c0_i32_0 = arith.constant 0 : i32
    %c0_i32_1 = arith.constant 0 : i32
    return %arg0, %c0_i32, %c0_i32_0 : i32, i32, i32
  }
}

</mosaic_0001>

<llo_original>
// kernel: tpu_custom_call.1
$region0: #{tpu_custom_call.1}
  #allocation0 [shape = 'u32[]', space=smem, size = 0x4, offset = 0x4, fixed_abs, tag = 'smem constant byte address 0x4 - core index']
  #allocation1 [shape = 'u32[144,128]{1,0:T(1,128)}', space=vmem, size = 0x12000, scoped, tag = 'internal scratch']
  #allocation2 [shape = 'f32[108,512]{1,0:T(8,128)}', space=vmem, size = 0x38000, scoped, tag = 'scratch operand']
  %s0 = inlined_call_operand.hbm [shape: f32[2,4,512], index: 0, kind: input, shape index: {}]
  %s1 = inlined_call_operand.hbm [shape: f32[8,108], index: 1, kind: input, shape index: {}]
  %s2 = inlined_call_operand.hbm [shape: f32[27,512], index: 2, kind: input, shape index: {}]
  %s3 = inlined_call_operand.hbm [shape: f32[2,8,512], index: 3, kind: output, shape index: {}]
  %s4 = sld [smem:[#allocation0]]
  $region57: #{tpu_custom_call.1} parent=0
    _
  %s6 = ssub.s32 1, %s4
  %s7 = scalar_select 0, %s6, %s4
  $region1: #{tpu_custom_call.1} parent=0
    #allocation3 [shape = 'u8[16384]{0}', space=vmem, size = 0x4000, scoped, tag = 'input window, operand 0']
    #allocation4 [shape = 's32[2]{0}', space=sflag, size = 0x8, scoped, tag = 'scoped memory for tpu_custom_call.1']
    #allocation5 [shape = 's32[2]{0}', space=sflag, size = 0x8, scoped, tag = 'scoped memory for tpu_custom_call.1']
    #allocation6 [shape = 'u8[4096]{0}', space=vmem, size = 0x1000, scoped, tag = 'input window, operand 1, single buffered']
    #allocation7 [shape = 's32[1]{0}', space=sflag, size = 0x4, scoped, tag = 'scoped memory for tpu_custom_call.1']
    #allocation8 [shape = 'u8[65536]{0}', space=vmem, size = 0x10000, scoped, tag = 'input window, operand 2, single buffered']
    #allocation9 [shape = 'u8[32768]{0}', space=vmem, size = 0x8000, scoped, tag = 'output window, operand 0']
    %8 = vsyncpa [#allocation4], 0
    %s9 = scalar_lea.sflag [#allocation4], 1
    %10 = vsyncpa %s9, 0
    %11 = vsyncpa [#allocation7], 0
    %12 = vsyncpa [#allocation5], 0
    %s13 = scalar_lea.sflag [#allocation5], 1
    %14 = vsyncpa %s13, 0
    loop: start=0, step=1, limit=4
    $region2: #{tpu_custom_call.1} parent=1 // loop_pre_header
      _
    $region3: #{tpu_custom_call.1} parent=1 // loop_header
      %s16 = sphi 0, %s20
      %p17 = scmp.ge.s32.totalorder %s16, 4
      %s26 = sphi 0, %s28
      %s29 = sphi 0, %s26
      %s30 = sphi 0, %s29
      %s46 = sphi 0, %s30
      %s50 = sphi 0, %s50
      %s52 = sphi 0, %s50
      %s53 = sphi 0, %s52
      %s67 = sphi 0, %s53
      %s71 = sphi 0, %s71
      %s73 = sphi 0, %s71
      %s74 = sphi 0, %s73
      %s88 = sphi 0, %s74
      %s94 = sphi 0, %s96
      %s97 = sphi 0, %s94
      %s98 = sphi 0, %s97
      %s114 = sphi 0, %s98
    $region4: #{tpu_custom_call.1} parent=1 // loop_header_branch
      %19 = sbr.rel (%p17) target = $region8
    $region5: #{tpu_custom_call.1} parent=1 // loop_body
      %s21 = ssub.s32 %s16, 1
      %s22 = ssub.s32 %s16, 2
      %s23 = sadd.s32 %s16, 1
      %s24 = ssub.s32 %s16, %s23
      %p25 = scmp.eq.s32.totalorder %s24, 0
      %s27 = sadd.s32 %s26, 1
      %s28 = scalar_select %p25, %s26, %s27
      %p31 = pneg %p25
      %p32 = scmp.eq.s32.totalorder %s16, 1
      %p33 = por %p31, %p32
      %p34 = scmp.ne.s32.totalorder %s26, %s29
      %p35 = scmp.eq.s32.totalorder %s16, 0
      %p36 = por %p34, %p35
      %p37 = scmp.ne.s32.totalorder %s26, %s29
      %p38 = scmp.eq.s32.totalorder %s21, 1
      %p39 = por %p37, %p38
      %p40 = scmp.ne.s32.totalorder %s29, %s30
      %p41 = scmp.eq.s32.totalorder %s21, 0
      %p42 = por %p40, %p41
      %p43 = scmp.ne.s32.totalorder %s29, %s30
      %p44 = scmp.eq.s32.totalorder %s22, 1
      %p45 = por %p43, %p44
      %p47 = scmp.ne.s32.totalorder %s30, %s46
      %p48 = scmp.eq.s32.totalorder %s22, 0
      %p49 = por %p47, %p48
      %s51 = sadd.s32 %s50, 1
      %p54 = scmp.eq.s32.totalorder %s16, 1
      %p55 = scmp.ne.s32.totalorder %s50, %s52
      %p56 = scmp.eq.s32.totalorder %s16, 0
      %p57 = por %p55, %p56
      %p58 = scmp.ne.s32.totalorder %s50, %s52
      %p59 = scmp.eq.s32.totalorder %s21, 1
      %p60 = por %p58, %p59
      %p61 = scmp.ne.s32.totalorder %s52, %s53
      %p62 = scmp.eq.s32.totalorder %s21, 0
      %p63 = por %p61, %p62
      %p64 = scmp.ne.s32.totalorder %s52, %s53
      %p65 = scmp.eq.s32.totalorder %s22, 1
      %p66 = por %p64, %p65
      %p68 = scmp.ne.s32.totalorder %s53, %s67
      %p69 = scmp.eq.s32.totalorder %s22, 0
      %p70 = por %p68, %p69
      %s72 = sadd.s32 %s71, 1
      %p75 = scmp.eq.s32.totalorder %s16, 1
      %p76 = scmp.ne.s32.totalorder %s71, %s73
      %p77 = scmp.eq.s32.totalorder %s16, 0
      %p78 = por %p76, %p77
      %p79 = scmp.ne.s32.totalorder %s71, %s73
      %p80 = scmp.eq.s32.totalorder %s21, 1
      %p81 = por %p79, %p80
      %p82 = scmp.ne.s32.totalorder %s73, %s74
      %p83 = scmp.eq.s32.totalorder %s21, 0
      %p84 = por %p82, %p83
      %p85 = scmp.ne.s32.totalorder %s73, %s74
      %p86 = scmp.eq.s32.totalorder %s22, 1
      %p87 = por %p85, %p86
      %p89 = scmp.ne.s32.totalorder %s74, %s88
      %p90 = scmp.eq.s32.totalorder %s22, 0
      %p91 = por %p89, %p90
      %s92 = ssub.s32 %s16, %s23
      %p93 = scmp.eq.s32.totalorder %s92, 0
      %s95 = sadd.s32 %s94, 1
      %s96 = scalar_select %p93, %s94, %s95
      %p99 = pneg %p93
      %p100 = scmp.eq.s32.totalorder %s16, 1
      %p101 = por %p99, %p100
      %p102 = scmp.ne.s32.totalorder %s94, %s97
      %p103 = scmp.eq.s32.totalorder %s16, 0
      %p104 = por %p102, %p103
      %p105 = scmp.ne.s32.totalorder %s94, %s97
      %p106 = scmp.eq.s32.totalorder %s21, 1
      %p107 = por %p105, %p106
      %p108 = scmp.ne.s32.totalorder %s97, %s98
      %p109 = scmp.eq.s32.totalorder %s21, 0
      %p110 = por %p108, %p109
      %p111 = scmp.ne.s32.totalorder %s97, %s98
      %p112 = scmp.eq.s32.totalorder %s22, 1
      %p113 = por %p111, %p112
      %p115 = scmp.ne.s32.totalorder %s98, %s114
      %p116 = scmp.eq.s32.totalorder %s22, 0
      %p117 = por %p115, %p116
      %p118 = scmp.le.s32.totalorder 1, %s16
      %p119 = scmp.lt.s32.totalorder %s16, 3
      %p120 = pnand %p118, %p119
      %p121 = pneg %p120
      // Predicated region
      $region9: #{tpu_custom_call.1} parent=5 // pred_check
        _
      $region10: #{tpu_custom_call.1} parent=5 // pred_check_branch
        %123 = sbr.rel (%p120) target = $region12
      $region11: #{tpu_custom_call.1} parent=5 // pred_region
        %s124 = ssub.s32 %s16, 1
        // Predicated region
        $region13: #{tpu_custom_call.1} parent=11 // pred_check
          %p125 = pneg %p63
        $region14: #{tpu_custom_call.1} parent=11 // pred_check_branch
          %127 = sbr.rel (%p125) target = $region16
        $region15: #{tpu_custom_call.1} parent=11 // pred_region
          %s129 = ssub.s32 128, 128
          %130 = vsyncadd [#allocation7], %s129
          %s132 = sshll.u32 [#allocation6], 4
          %s133 = int_to_ptr.vmem [resolvable:$true] %s132
          %135 = dma.hbm_to_vmem [thread:$0]  %s1, 128, %s133, [#allocation7]
        $region16: #{tpu_custom_call.1} parent=11 // pred_fallthru
          _
        // Predicated region
        $region17: #{tpu_custom_call.1} parent=11 // pred_check
          %p136 = pneg %p84
        $region18: #{tpu_custom_call.1} parent=11 // pred_check_branch
          %138 = sbr.rel (%p136) target = $region20
        $region19: #{tpu_custom_call.1} parent=11 // pred_region
          %s140 = ssub.s32 2048, 2048
          %141 = vsyncadd [#allocation7], %s140
          %s142 = sshll.u32 [#allocation8], 4
          %s143 = int_to_ptr.vmem [resolvable:$true] %s142
          %148 = dma.hbm_to_vmem [thread:$0]  %s2, 2048, %s143, [#allocation7], 512, 512, 32
        $region20: #{tpu_custom_call.1} parent=11 // pred_fallthru
          _
      $region12: #{tpu_custom_call.1} parent=5 // pred_fallthru
        _
      %p149 = scmp.lt.s32.totalorder %s16, 2
      // Predicated region
      $region21: #{tpu_custom_call.1} parent=5 // pred_check
        %p150 = pneg %p149
      $region22: #{tpu_custom_call.1} parent=5 // pred_check_branch
        %152 = sbr.rel (%p150) target = $region24
      $region23: #{tpu_custom_call.1} parent=5 // pred_region
        // Predicated region
        $region25: #{tpu_custom_call.1} parent=23 // pred_check
          %p153 = pneg %p36
        $region26: #{tpu_custom_call.1} parent=23 // pred_check_branch
          %155 = sbr.rel (%p153) target = $region28
        $region27: #{tpu_custom_call.1} parent=23 // pred_region
          %s156 = sand.u32 %s26, 1
          %s157 = scalar_lea.sflag [#allocation4], %s156
          %s158 = sand.u32 %s26, 1
          %s159 = smul.addr %s158, 16
          %s160 = scalar_lea.vmem [#allocation3], %s159
          %s162 = ssub.s32 256, 256
          %163 = vsyncadd %s157, %s162
          %s164 = smul.addr %s16, 4
          %s165 = smul.addr %s164, 64
          %s166 = scalar_lea.hbm %s0, %s165
          %s168 = sshll.u32 %s160, 4
          %s169 = int_to_ptr.vmem [resolvable:$true] %s168
          %171 = dma.hbm_to_vmem [thread:$0]  %s166, 256, %s169, %s157
        $region28: #{tpu_custom_call.1} parent=23 // pred_fallthru
          _
      $region24: #{tpu_custom_call.1} parent=5 // pred_fallthru
        _
      %p172 = scmp.le.s32.totalorder 1, %s16
      %p173 = scmp.lt.s32.totalorder %s16, 3
      %p174 = pnand %p172, %p173
      %p175 = pneg %p174
      // Predicated region
      $region29: #{tpu_custom_call.1} parent=5 // pred_check
        _
      $region30: #{tpu_custom_call.1} parent=5 // pred_check_branch
        %177 = sbr.rel (%p174) target = $region32
      $region31: #{tpu_custom_call.1} parent=5 // pred_region
        %s178 = ssub.s32 %s16, 1
        %s179 = sand.u32 %s29, 1
        %s180 = scalar_lea.sflag [#allocation4], %s179
        %s181 = sand.u32 %s29, 1
        %s182 = smul.addr %s181, 16
        %s183 = scalar_lea.vmem [#allocation3], %s182
        // Predicated region
        $region33: #{tpu_custom_call.1} parent=31 // pred_check
          %p184 = pneg %p42
        $region34: #{tpu_custom_call.1} parent=31 // pred_check_branch
          %186 = sbr.rel (%p184) target = $region36
        $region35: #{tpu_custom_call.1} parent=31 // pred_region
          %187 = dma.done %s180, 256
        $region36: #{tpu_custom_call.1} parent=31 // pred_fallthru
          _
        // Predicated region
        $region37: #{tpu_custom_call.1} parent=31 // pred_check
          %p188 = pneg %p63
        $region38: #{tpu_custom_call.1} parent=31 // pred_check_branch
          %190 = sbr.rel (%p188) target = $region40
        $region39: #{tpu_custom_call.1} parent=31 // pred_region
          %191 = dma.done [#allocation7], 128
        $region40: #{tpu_custom_call.1} parent=31 // pred_fallthru
          _
        // Predicated region
        $region41: #{tpu_custom_call.1} parent=31 // pred_check
          %p192 = pneg %p84
        $region42: #{tpu_custom_call.1} parent=31 // pred_check_branch
          %194 = sbr.rel (%p192) target = $region44
        $region43: #{tpu_custom_call.1} parent=31 // pred_region
          %195 = dma.done [#allocation7], 2048
        $region44: #{tpu_custom_call.1} parent=31 // pred_fallthru
          _
        %s196 = sand.u32 %s29, 1
        %s197 = scalar_lea.sflag [#allocation4], %s196
        %s198 = sand.u32 %s29, 1
        %s199 = smul.addr %s198, 16
        %s200 = scalar_lea.vmem [#allocation3], %s199
        %p201 = pneg %p42
        %p202 = pneg %p39
        %p203 = pneg %p63
        %p204 = pneg %p60
        %p205 = pneg %p84
        %p206 = pneg %p81
        %p207 = pneg %p110
        %p208 = pneg %p107
        %s209 = sand.u32 %s97, 1
        %s210 = scalar_lea.sflag [#allocation5], %s209
        %s211 = sand.u32 %s97, 1
        %s212 = smul.addr %s211, 32
        %s213 = scalar_lea.vmem [#allocation9], %s212
        %v214 = vld [vmem:[%s183] sm:$0xff]
        %v215 = vld [vmem:[%s183 + $0x8] sm:$0xff]
        %v218 = vcombine.high %v214, %v214
        %v219 = vcombine.high %v215, %v215
        %vm222 = vcmask 1043456
        %v223 = vsel %vm222, %v214, 0.0
        %v224 = vsel %vm222, %v218, 0.0
        %v225 = vadd.f32 %v223, %v224
        %v226 = vsel %vm222, %v215, 0.0
        %v227 = vadd.f32 %v225, %v226
        %v228 = vsel %vm222, %v219, 0.0
        %v229 = vadd.f32 %v227, %v228
        %230 = vadd.xlane.f32.xlu0 %v229
        %v231 = vpop.xlane.xlu0 %230
        %v232 = vmul.f32 %v214, %v214
        %v233 = vmul.f32 %v215, %v215
        %v236 = vcombine.high %v232, %v232
        %v237 = vcombine.high %v233, %v233
        %v240 = vsel %vm222, %v232, 0.0
        %v241 = vsel %vm222, %v236, 0.0
        %v242 = vadd.f32 %v240, %v241
        %v243 = vsel %vm222, %v233, 0.0
        %v244 = vadd.f32 %v242, %v243
        %v245 = vsel %vm222, %v237, 0.0
        %v246 = vadd.f32 %v244, %v245
        %247 = vadd.xlane.f32.xlu0 %v246
        %v248 = vpop.xlane.xlu0 %247
        %v249 = vmul.f32 %v231, 0.001953125
        %v250 = vmul.f32 %v248, 0.001953125
        %v251 = vmul.f32 %v249, %v249
        %v252 = vsub.f32 %v250, %v251
        %v253 = vadd.f32 %v252, 1e-05
        %v254 = vrsqrt.pop %v253
        %v257 = vunpack.c.l.s4 839922192
        %v258 = vunpack.c.0.s8 %v257
        %v259 = vlaneseq
        %v260 = vshrl.u32 %v259, 7
        %v261 = vsub.s32 %v258, %v260
        %v262 = vrot.slane %v249, %v261
        %v264 = vsub.f32 %v214, %v262
        %v265 = vsub.f32 %v215, %v262
        %v268 = vunpack.c.l.s4 839922192
        %v269 = vunpack.c.0.s8 %v268
        %v270 = vlaneseq
        %v271 = vshrl.u32 %v270, 7
        %v272 = vsub.s32 %v269, %v271
        %v273 = vrot.slane %v254, %v272
        %v275 = vmul.f32 %v264, %v273
        %v276 = vmul.f32 %v265, %v273
        %v277 = vmax.f32 %v275, 0.0
        %v278 = vmax.f32 %v276, 0.0
        %v281 = vcombine.high %v277, %v277
        %v282 = vcombine.high %v278, %v278
        %285 = vrot.lane.b32.xlu0 %v277, 73
        %v286 = vpop.permute.xlu0 %285
        %287 = vrot.lane.b32.xlu0 %v281, 73
        %v288 = vpop.permute.xlu0 %287
        %289 = vrot.lane.b32.xlu0 %v278, 73
        %v290 = vpop.permute.xlu0 %289
        %291 = vrot.lane.b32.xlu0 %v282, 73
        %v292 = vpop.permute.xlu0 %291
        %v293 = vlaneseq
        %v294 = vand.u32 %v293, 127
        %vm295 = vcmp.lt.s32.totalorder %v294, 73
        %v296 = vsel %vm295, %v290, %v292
        %v297 = vsel %vm295, %v288, %v290
        %v298 = vsel %vm295, %v286, %v288
        %v299 = vsel %vm295, %v292, %v286
        %v300 = vld [vmem:[#allocation8] ss:$8 sm:$0xf]
        %v302 = vlaneseq
        %v303 = vshrl.u32 %v302, 7
        %v304 = vsub.s32 0, %v303
        %v305 = vrot.slane %v300, %v304
        %v306 = vlaneseq
        %v307 = vshrl.u32 %v306, 7
        %v308 = vsub.s32 1, %v307
        %v309 = vrot.slane %v300, %v308
        %v310 = vlaneseq
        %v311 = vshrl.u32 %v310, 7
        %v312 = vsub.s32 2, %v311
        %v313 = vrot.slane %v300, %v312
        %v314 = vlaneseq
        %v315 = vshrl.u32 %v314, 7
        %v316 = vsub.s32 3, %v315
        %v317 = vrot.slane %v300, %v316
        %v322 = vmul.f32 %v299, %v305
        %v323 = vmul.f32 %v298, %v309
        %v324 = vmul.f32 %v297, %v313
        %v325 = vmul.f32 %v296, %v317
        %326 = vst [vmem:[#allocation2] sm:$0xf] %v322
        %327 = vst [vmem:[#allocation2 + $0x8] sm:$0xf] %v323
        %328 = vst [vmem:[#allocation2 + $0x10] sm:$0xf] %v324
        %329 = vst [vmem:[#allocation2 + $0x18] sm:$0xf] %v325
        %330 = vrot.lane.b32.xlu0 %v277, 72
        %v331 = vpop.permute.xlu0 %330
        %332 = vrot.lane.b32.xlu0 %v281, 72
        %v333 = vpop.permute.xlu0 %332
        %334 = vrot.lane.b32.xlu0 %v278, 72
        %v335 = vpop.permute.xlu0 %334
        %336 = vrot.lane.b32.xlu0 %v282, 72
        %v337 = vpop.permute.xlu0 %336
        %vm338 = vcmp.lt.s32.totalorder %v294, 72
        %v339 = vsel %vm338, %v335, %v337
        %v340 = vsel %vm338, %v333, %v335
        %v341 = vsel %vm338, %v331, %v333
        %v342 = vsel %vm338, %v337, %v331
        %s343 = scalar_lea.vmem [#allocation8], 1
        %v344 = vld [vmem:[%s343] ss:$8 sm:$0xf]
        %v346 = vlaneseq
        %v347 = vshrl.u32 %v346, 7
        %v348 = vsub.s32 0, %v347
        %v349 = vrot.slane %v344, %v348
        %v350 = vlaneseq
        %v351 = vshrl.u32 %v350, 7
        %v352 = vsub.s32 1, %v351
        %v353 = vrot.slane %v344, %v352
        %v354 = vlaneseq
        %v355 = vshrl.u32 %v354, 7
        %v356 = vsub.s32 2, %v355
        %v357 = vrot.slane %v344, %v356
        %v358 = vlaneseq
        %v359 = vshrl.u32 %v358, 7
        %v360 = vsub.s32 3, %v359
        %v361 = vrot.slane %v344, %v360
        %v366 = vmul.f32 %v342, %v349
        %v367 = vmul.f32 %v341, %v353
        %v368 = vmul.f32 %v340, %v357
        %v369 = vmul.f32 %v339, %v361
        %v374 = vrot.slane %v366, 4
        %v375 = vrot.slane %v367, 4
        %v376 = vrot.slane %v368, 4
        %v377 = vrot.slane %v369, 4
        %382 = vst [vmem:[#allocation2] sm:$0xf0] %v374
        %383 = vst [vmem:[#allocation2 + $0x8] sm:$0xf0] %v375
        %384 = vst [vmem:[#allocation2 + $0x10] sm:$0xf0] %v376
        %385 = vst [vmem:[#allocation2 + $0x18] sm:$0xf0] %v377
        %386 = vrot.lane.b32.xlu0 %v277, 71
        %v387 = vpop.permute.xlu0 %386
        %388 = vrot.lane.b32.xlu0 %v281, 71
        %v389 = vpop.permute.xlu0 %388
        %390 = vrot.lane.b32.xlu0 %v278, 71
        %v391 = vpop.permute.xlu0 %390
        %392 = vrot.lane.b32.xlu0 %v282, 71
        %v393 = vpop.permute.xlu0 %392
        %vm394 = vcmp.lt.s32.totalorder %v294, 71
        %v395 = vsel %vm394, %v391, %v393
        %v396 = vsel %vm394, %v389, %v391
        %v397 = vsel %vm394, %v387, %v389
        %v398 = vsel %vm394, %v393, %v387
        %s399 = scalar_lea.vmem [#allocation8], 2
        %v400 = vld [vmem:[%s399] ss:$8 sm:$0xf]
        %v402 = vlaneseq
        %v403 = vshrl.u32 %v402, 7
        %v404 = vsub.s32 0, %v403
        %v405 = vrot.slane %v400, %v404
        %v406 = vlaneseq
        %v407 = vshrl.u32 %v406, 7
        %v408 = vsub.s32 1, %v407
        %v409 = vrot.slane %v400, %v408
        %v410 = vlaneseq
        %v411 = vshrl.u32 %v410, 7
        %v412 = vsub.s32 2, %v411
        %v413 = vrot.slane %v400, %v412
        %v414 = vlaneseq
        %v415 = vshrl.u32 %v414, 7
        %v416 = vsub.s32 3, %v415
        %v417 = vrot.slane %v400, %v416
        %v422 = vmul.f32 %v398, %v405
        %v423 = vmul.f32 %v397, %v409
        %v424 = vmul.f32 %v396, %v413
        %v425 = vmul.f32 %v395, %v417
        %426 = vst [vmem:[#allocation2 + $0x20] sm:$0xf] %v422
        %427 = vst [vmem:[#allocation2 + $0x28] sm:$0xf] %v423
        %428 = vst [vmem:[#allocation2 + $0x30] sm:$0xf] %v424
        %429 = vst [vmem:[#allocation2 + $0x38] sm:$0xf] %v425
        %430 = vrot.lane.b32.xlu0 %v277, 65
        %v431 = vpop.permute.xlu0 %430
        %432 = vrot.lane.b32.xlu0 %v281, 65
        %v433 = vpop.permute.xlu0 %432
        %434 = vrot.lane.b32.xlu0 %v278, 65
        %v435 = vpop.permute.xlu0 %434
        %436 = vrot.lane.b32.xlu0 %v282, 65
        %v437 = vpop.permute.xlu0 %436
        %vm438 = vcmp.lt.s32.totalorder %v294, 65
        %v439 = vsel %vm438, %v435, %v437
        %v440 = vsel %vm438, %v433, %v435
        %v441 = vsel %vm438, %v431, %v433
        %v442 = vsel %vm438, %v437, %v431
        %s443 = scalar_lea.vmem [#allocation8], 3
        %v444 = vld [vmem:[%s443] ss:$8 sm:$0xf]
        %v446 = vlaneseq
        %v447 = vshrl.u32 %v446, 7
        %v448 = vsub.s32 0, %v447
        %v449 = vrot.slane %v444, %v448
        %v450 = vlaneseq
        %v451 = vshrl.u32 %v450, 7
        %v452 = vsub.s32 1, %v451
        %v453 = vrot.slane %v444, %v452
        %v454 = vlaneseq
        %v455 = vshrl.u32 %v454, 7
        %v456 = vsub.s32 2, %v455
        %v457 = vrot.slane %v444, %v456
        %v458 = vlaneseq
        %v459 = vshrl.u32 %v458, 7
        %v460 = vsub.s32 3, %v459
        %v461 = vrot.slane %v444, %v460
        %v466 = vmul.f32 %v442, %v449
        %v467 = vmul.f32 %v441, %v453
        %v468 = vmul.f32 %v440, %v457
        %v469 = vmul.f32 %v439, %v461
        %v474 = vrot.slane %v466, 4
        %v475 = vrot.slane %v467, 4
        %v476 = vrot.slane %v468, 4
        %v477 = vrot.slane %v469, 4
        %482 = vst [vmem:[#allocation2 + $0x20] sm:$0xf0] %v474
        %483 = vst [vmem:[#allocation2 + $0x28] sm:$0xf0] %v475
        %484 = vst [vmem:[#allocation2 + $0x30] sm:$0xf0] %v476
        %485 = vst [vmem:[#allocation2 + $0x38] sm:$0xf0] %v477
        %486 = vrot.lane.b32.xlu0 %v277, 64
        %v487 = vpop.permute.xlu0 %486
        %488 = vrot.lane.b32.xlu0 %v281, 64
        %v489 = vpop.permute.xlu0 %488
        %490 = vrot.lane.b32.xlu0 %v278, 64
        %v491 = vpop.permute.xlu0 %490
        %492 = vrot.lane.b32.xlu0 %v282, 64
        %v493 = vpop.permute.xlu0 %492
        %vm494 = vcmp.lt.s32.totalorder %v294, 64
        %v495 = vsel %vm494, %v491, %v493
        %v496 = vsel %vm494, %v489, %v491
        %v497 = vsel %vm494, %v487, %v489
        %v498 = vsel %vm494, %v493, %v487
        %s499 = scalar_lea.vmem [#allocation8], 4
        %v500 = vld [vmem:[%s499] ss:$8 sm:$0xf]
        %v502 = vlaneseq
        %v503 = vshrl.u32 %v502, 7
        %v504 = vsub.s32 0, %v503
        %v505 = vrot.slane %v500, %v504
        %v506 = vlaneseq
        %v507 = vshrl.u32 %v506, 7
        %v508 = vsub.s32 1, %v507
        %v509 = vrot.slane %v500, %v508
        %v510 = vlaneseq
        %v511 = vshrl.u32 %v510, 7
        %v512 = vsub.s32 2, %v511
        %v513 = vrot.slane %v500, %v512
        %v514 = vlaneseq
        %v515 = vshrl.u32 %v514, 7
        %v516 = vsub.s32 3, %v515
        %v517 = vrot.slane %v500, %v516
        %v522 = vmul.f32 %v498, %v505
        %v523 = vmul.f32 %v497, %v509
        %v524 = vmul.f32 %v496, %v513
        %v525 = vmul.f32 %v495, %v517
        %526 = vst [vmem:[#allocation2 + $0x40] sm:$0xf] %v522
        %527 = vst [vmem:[#allocation2 + $0x48] sm:$0xf] %v523
        %528 = vst [vmem:[#allocation2 + $0x50] sm:$0xf] %v524
        %529 = vst [vmem:[#allocation2 + $0x58] sm:$0xf] %v525
        %530 = vrot.lane.b32.xlu0 %v277, 63
        %v531 = vpop.permute.xlu0 %530
        %532 = vrot.lane.b32.xlu0 %v281, 63
        %v533 = vpop.permute.xlu0 %532
        %534 = vrot.lane.b32.xlu0 %v278, 63
        %v535 = vpop.permute.xlu0 %534
        %536 = vrot.lane.b32.xlu0 %v282, 63
        %v537 = vpop.permute.xlu0 %536
        %vm538 = vcmp.lt.s32.totalorder %v294, 63
        %v539 = vsel %vm538, %v535, %v537
        %v540 = vsel %vm538, %v533, %v535
        %v541 = vsel %vm538, %v531, %v533
        %v542 = vsel %vm538, %v537, %v531
        %s543 = scalar_lea.vmem [#allocation8], 5
        %v544 = vld [vmem:[%s543] ss:$8 sm:$0xf]
        %v546 = vlaneseq
        %v547 = vshrl.u32 %v546, 7
        %v548 = vsub.s32 0, %v547
        %v549 = vrot.slane %v544, %v548
        %v550 = vlaneseq
        %v551 = vshrl.u32 %v550, 7
        %v552 = vsub.s32 1, %v551
        %v553 = vrot.slane %v544, %v552
        %v554 = vlaneseq
        %v555 = vshrl.u32 %v554, 7
        %v556 = vsub.s32 2, %v555
        %v557 = vrot.slane %v544, %v556
        %v558 = vlaneseq
        %v559 = vshrl.u32 %v558, 7
        %v560 = vsub.s32 3, %v559
        %v561 = vrot.slane %v544, %v560
        %v566 = vmul.f32 %v542, %v549
        %v567 = vmul.f32 %v541, %v553
        %v568 = vmul.f32 %v540, %v557
        %v569 = vmul.f32 %v539, %v561
        %v574 = vrot.slane %v566, 4
        %v575 = vrot.slane %v567, 4
        %v576 = vrot.slane %v568, 4
        %v577 = vrot.slane %v569, 4
        %582 = vst [vmem:[#allocation2 + $0x40] sm:$0xf0] %v574
        %583 = vst [vmem:[#allocation2 + $0x48] sm:$0xf0] %v575
        %584 = vst [vmem:[#allocation2 + $0x50] sm:$0xf0] %v576
        %585 = vst [vmem:[#allocation2 + $0x58] sm:$0xf0] %v577
        %586 = vrot.lane.b32.xlu0 %v277, 57
        %v587 = vpop.permute.xlu0 %586
        %588 = vrot.lane.b32.xlu0 %v281, 57
        %v589 = vpop.permute.xlu0 %588
        %590 = vrot.lane.b32.xlu0 %v278, 57
        %v591 = vpop.permute.xlu0 %590
        %592 = vrot.lane.b32.xlu0 %v282, 57
        %v593 = vpop.permute.xlu0 %592
        %vm594 = vcmp.lt.s32.totalorder %v294, 57
        %v595 = vsel %vm594, %v591, %v593
        %v596 = vsel %vm594, %v589, %v591
        %v597 = vsel %vm594, %v587, %v589
        %v598 = vsel %vm594, %v593, %v587
        %s599 = scalar_lea.vmem [#allocation8], 6
        %v600 = vld [vmem:[%s599] ss:$8 sm:$0xf]
        %v602 = vlaneseq
        %v603 = vshrl.u32 %v602, 7
        %v604 = vsub.s32 0, %v603
        %v605 = vrot.slane %v600, %v604
        %v606 = vlaneseq
        %v607 = vshrl.u32 %v606, 7
        %v608 = vsub.s32 1, %v607
        %v609 = vrot.slane %v600, %v608
        %v610 = vlaneseq
        %v611 = vshrl.u32 %v610, 7
        %v612 = vsub.s32 2, %v611
        %v613 = vrot.slane %v600, %v612
        %v614 = vlaneseq
        %v615 = vshrl.u32 %v614, 7
        %v616 = vsub.s32 3, %v615
        %v617 = vrot.slane %v600, %v616
        %v622 = vmul.f32 %v598, %v605
        %v623 = vmul.f32 %v597, %v609
        %v624 = vmul.f32 %v596, %v613
        %v625 = vmul.f32 %v595, %v617
        %626 = vst [vmem:[#allocation2 + $0x60] sm:$0xf] %v622
        %627 = vst [vmem:[#allocation2 + $0x68] sm:$0xf] %v623
        %628 = vst [vmem:[#allocation2 + $0x70] sm:$0xf] %v624
        %629 = vst [vmem:[#allocation2 + $0x78] sm:$0xf] %v625
        %630 = vrot.lane.b32.xlu0 %v277, 56
        %v631 = vpop.permute.xlu0 %630
        %632 = vrot.lane.b32.xlu0 %v281, 56
        %v633 = vpop.permute.xlu0 %632
        %634 = vrot.lane.b32.xlu0 %v278, 56
        %v635 = vpop.permute.xlu0 %634
        %636 = vrot.lane.b32.xlu0 %v282, 56
        %v637 = vpop.permute.xlu0 %636
        %vm638 = vcmp.lt.s32.totalorder %v294, 56
        %v639 = vsel %vm638, %v635, %v637
        %v640 = vsel %vm638, %v633, %v635
        %v641 = vsel %vm638, %v631, %v633
        %v642 = vsel %vm638, %v637, %v631
        %s643 = scalar_lea.vmem [#allocation8], 7
        %v644 = vld [vmem:[%s643] ss:$8 sm:$0xf]
        %v646 = vlaneseq
        %v647 = vshrl.u32 %v646, 7
        %v648 = vsub.s32 0, %v647
        %v649 = vrot.slane %v644, %v648
        %v650 = vlaneseq
        %v651 = vshrl.u32 %v650, 7
        %v652 = vsub.s32 1, %v651
        %v653 = vrot.slane %v644, %v652
        %v654 = vlaneseq
        %v655 = vshrl.u32 %v654, 7
        %v656 = vsub.s32 2, %v655
        %v657 = vrot.slane %v644, %v656
        %v658 = vlaneseq
        %v659 = vshrl.u32 %v658, 7
        %v660 = vsub.s32 3, %v659
        %v661 = vrot.slane %v644, %v660
        %v666 = vmul.f32 %v642, %v649
        %v667 = vmul.f32 %v641, %v653
        %v668 = vmul.f32 %v640, %v657
        %v669 = vmul.f32 %v639, %v661
        %v674 = vrot.slane %v666, 4
        %v675 = vrot.slane %v667, 4
        %v676 = vrot.slane %v668, 4
        %v677 = vrot.slane %v669, 4
        %682 = vst [vmem:[#allocation2 + $0x60] sm:$0xf0] %v674
        %683 = vst [vmem:[#allocation2 + $0x68] sm:$0xf0] %v675
        %684 = vst [vmem:[#allocation2 + $0x70] sm:$0xf0] %v676
        %685 = vst [vmem:[#allocation2 + $0x78] sm:$0xf0] %v677
        %686 = vrot.lane.b32.xlu0 %v277, 55
        %v687 = vpop.permute.xlu0 %686
        %688 = vrot.lane.b32.xlu0 %v281, 55
        %v689 = vpop.permute.xlu0 %688
        %690 = vrot.lane.b32.xlu0 %v278, 55
        %v691 = vpop.permute.xlu0 %690
        %692 = vrot.lane.b32.xlu0 %v282, 55
        %v693 = vpop.permute.xlu0 %692
        %vm694 = vcmp.lt.s32.totalorder %v294, 55
        %v695 = vsel %vm694, %v691, %v693
        %v696 = vsel %vm694, %v689, %v691
        %v697 = vsel %vm694, %v687, %v689
        %v698 = vsel %vm694, %v693, %v687
        %s699 = scalar_lea.vmem [#allocation8], 32
        %v700 = vld [vmem:[%s699] ss:$8 sm:$0xf]
        %v702 = vlaneseq
        %v703 = vshrl.u32 %v702, 7
        %v704 = vsub.s32 0, %v703
        %v705 = vrot.slane %v700, %v704
        %v706 = vlaneseq
        %v707 = vshrl.u32 %v706, 7
        %v708 = vsub.s32 1, %v707
        %v709 = vrot.slane %v700, %v708
        %v710 = vlaneseq
        %v711 = vshrl.u32 %v710, 7
        %v712 = vsub.s32 2, %v711
        %v713 = vrot.slane %v700, %v712
        %v714 = vlaneseq
        %v715 = vshrl.u32 %v714, 7
        %v716 = vsub.s32 3, %v715
        %v717 = vrot.slane %v700, %v716
        %v722 = vmul.f32 %v698, %v705
        %v723 = vmul.f32 %v697, %v709
        %v724 = vmul.f32 %v696, %v713
        %v725 = vmul.f32 %v695, %v717
        %726 = vst [vmem:[#allocation2 + $0x80] sm:$0xf] %v722
        %727 = vst [vmem:[#allocation2 + $0x88] sm:$0xf] %v723
        %728 = vst [vmem:[#allocation2 + $0x90] sm:$0xf] %v724
        %729 = vst [vmem:[#allocation2 + $0x98] sm:$0xf] %v725
        %730 = vrot.lane.b32.xlu0 %v277, 9
        %v731 = vpop.permute.xlu0 %730
        %732 = vrot.lane.b32.xlu0 %v281, 9
        %v733 = vpop.permute.xlu0 %732
        %734 = vrot.lane.b32.xlu0 %v278, 9
        %v735 = vpop.permute.xlu0 %734
        %736 = vrot.lane.b32.xlu0 %v282, 9
        %v737 = vpop.permute.xlu0 %736
        %vm738 = vcmp.lt.s32.totalorder %v294, 9
        %v739 = vsel %vm738, %v735, %v737
        %v740 = vsel %vm738, %v733, %v735
        %v741 = vsel %vm738, %v731, %v733
        %v742 = vsel %vm738, %v737, %v731
        %s743 = scalar_lea.vmem [#allocation8], 33
        %v744 = vld [vmem:[%s743] ss:$8 sm:$0xf]
        %v746 = vlaneseq
        %v747 = vshrl.u32 %v746, 7
        %v748 = vsub.s32 0, %v747
        %v749 = vrot.slane %v744, %v748
        %v750 = vlaneseq
        %v751 = vshrl.u32 %v750, 7
        %v752 = vsub.s32 1, %v751
        %v753 = vrot.slane %v744, %v752
        %v754 = vlaneseq
        %v755 = vshrl.u32 %v754, 7
        %v756 = vsub.s32 2, %v755
        %v757 = vrot.slane %v744, %v756
        %v758 = vlaneseq
        %v759 = vshrl.u32 %v758, 7
        %v760 = vsub.s32 3, %v759
        %v761 = vrot.slane %v744, %v760
        %v766 = vmul.f32 %v742, %v749
        %v767 = vmul.f32 %v741, %v753
        %v768 = vmul.f32 %v740, %v757
        %v769 = vmul.f32 %v739, %v761
        %v774 = vrot.slane %v766, 4
        %v775 = vrot.slane %v767, 4
        %v776 = vrot.slane %v768, 4
        %v777 = vrot.slane %v769, 4
        %782 = vst [vmem:[#allocation2 + $0x80] sm:$0xf0] %v774
        %783 = vst [vmem:[#allocation2 + $0x88] sm:$0xf0] %v775
        %784 = vst [vmem:[#allocation2 + $0x90] sm:$0xf0] %v776
        %785 = vst [vmem:[#allocation2 + $0x98] sm:$0xf0] %v777
        %786 = vrot.lane.b32.xlu0 %v277, 8
        %v787 = vpop.permute.xlu0 %786
        %788 = vrot.lane.b32.xlu0 %v281, 8
        %v789 = vpop.permute.xlu0 %788
        %790 = vrot.lane.b32.xlu0 %v278, 8
        %v791 = vpop.permute.xlu0 %790
        %792 = vrot.lane.b32.xlu0 %v282, 8
        %v793 = vpop.permute.xlu0 %792
        %vm794 = vcmp.lt.s32.totalorder %v294, 8
        %v795 = vsel %vm794, %v791, %v793
        %v796 = vsel %vm794, %v789, %v791
        %v797 = vsel %vm794, %v787, %v789
        %v798 = vsel %vm794, %v793, %v787
        %s799 = scalar_lea.vmem [#allocation8], 34
        %v800 = vld [vmem:[%s799] ss:$8 sm:$0xf]
        %v802 = vlaneseq
        %v803 = vshrl.u32 %v802, 7
        %v804 = vsub.s32 0, %v803
        %v805 = vrot.slane %v800, %v804
        %v806 = vlaneseq
        %v807 = vshrl.u32 %v806, 7
        %v808 = vsub.s32 1, %v807
        %v809 = vrot.slane %v800, %v808
        %v810 = vlaneseq
        %v811 = vshrl.u32 %v810, 7
        %v812 = vsub.s32 2, %v811
        %v813 = vrot.slane %v800, %v812
        %v814 = vlaneseq
        %v815 = vshrl.u32 %v814, 7
        %v816 = vsub.s32 3, %v815
        %v817 = vrot.slane %v800, %v816
        %v822 = vmul.f32 %v798, %v805
        %v823 = vmul.f32 %v797, %v809
        %v824 = vmul.f32 %v796, %v813
        %v825 = vmul.f32 %v795, %v817
        %826 = vst [vmem:[#allocation2 + $0xa0] sm:$0xf] %v822
        %827 = vst [vmem:[#allocation2 + $0xa8] sm:$0xf] %v823
        %828 = vst [vmem:[#allocation2 + $0xb0] sm:$0xf] %v824
        %829 = vst [vmem:[#allocation2 + $0xb8] sm:$0xf] %v825
        %830 = vrot.lane.b32.xlu0 %v277, 7
        %v831 = vpop.permute.xlu0 %830
        %832 = vrot.lane.b32.xlu0 %v281, 7
        %v833 = vpop.permute.xlu0 %832
        %834 = vrot.lane.b32.xlu0 %v278, 7
        %v835 = vpop.permute.xlu0 %834
        %836 = vrot.lane.b32.xlu0 %v282, 7
        %v837 = vpop.permute.xlu0 %836
        %vm838 = vcmp.lt.s32.totalorder %v294, 7
        %v839 = vsel %vm838, %v835, %v837
        %v840 = vsel %vm838, %v833, %v835
        %v841 = vsel %vm838, %v831, %v833
        %v842 = vsel %vm838, %v837, %v831
        %s843 = scalar_lea.vmem [#allocation8], 35
        %v844 = vld [vmem:[%s843] ss:$8 sm:$0xf]
        %v846 = vlaneseq
        %v847 = vshrl.u32 %v846, 7
        %v848 = vsub.s32 0, %v847
        %v849 = vrot.slane %v844, %v848
        %v850 = vlaneseq
        %v851 = vshrl.u32 %v850, 7
        %v852 = vsub.s32 1, %v851
        %v853 = vrot.slane %v844, %v852
        %v854 = vlaneseq
        %v855 = vshrl.u32 %v854, 7
        %v856 = vsub.s32 2, %v855
        %v857 = vrot.slane %v844, %v856
        %v858 = vlaneseq
        %v859 = vshrl.u32 %v858, 7
        %v860 = vsub.s32 3, %v859
        %v861 = vrot.slane %v844, %v860
        %v866 = vmul.f32 %v842, %v849
        %v867 = vmul.f32 %v841, %v853
        %v868 = vmul.f32 %v840, %v857
        %v869 = vmul.f32 %v839, %v861
        %v874 = vrot.slane %v866, 4
        %v875 = vrot.slane %v867, 4
        %v876 = vrot.slane %v868, 4
        %v877 = vrot.slane %v869, 4
        %882 = vst [vmem:[#allocation2 + $0xa0] sm:$0xf0] %v874
        %883 = vst [vmem:[#allocation2 + $0xa8] sm:$0xf0] %v875
        %884 = vst [vmem:[#allocation2 + $0xb0] sm:$0xf0] %v876
        %885 = vst [vmem:[#allocation2 + $0xb8] sm:$0xf0] %v877
        %886 = vrot.lane.b32.xlu0 %v277, 1
        %v887 = vpop.permute.xlu0 %886
        %888 = vrot.lane.b32.xlu0 %v281, 1
        %v889 = vpop.permute.xlu0 %888
        %890 = vrot.lane.b32.xlu0 %v278, 1
        %v891 = vpop.permute.xlu0 %890
        %892 = vrot.lane.b32.xlu0 %v282, 1
        %v893 = vpop.permute.xlu0 %892
        %vm894 = vcmp.lt.s32.totalorder %v294, 1
        %v895 = vsel %vm894, %v891, %v893
        %v896 = vsel %vm894, %v889, %v891
        %v897 = vsel %vm894, %v887, %v889
        %v898 = vsel %vm894, %v893, %v887
        %s899 = scalar_lea.vmem [#allocation8], 36
        %v900 = vld [vmem:[%s899] ss:$8 sm:$0xf]
        %v902 = vlaneseq
        %v903 = vshrl.u32 %v902, 7
        %v904 = vsub.s32 0, %v903
        %v905 = vrot.slane %v900, %v904
        %v906 = vlaneseq
        %v907 = vshrl.u32 %v906, 7
        %v908 = vsub.s32 1, %v907
        %v909 = vrot.slane %v900, %v908
        %v910 = vlaneseq
        %v911 = vshrl.u32 %v910, 7
        %v912 = vsub.s32 2, %v911
        %v913 = vrot.slane %v900, %v912
        %v914 = vlaneseq
        %v915 = vshrl.u32 %v914, 7
        %v916 = vsub.s32 3, %v915
        %v917 = vrot.slane %v900, %v916
        %v922 = vmul.f32 %v898, %v905
        %v923 = vmul.f32 %v897, %v909
        %v924 = vmul.f32 %v896, %v913
        %v925 = vmul.f32 %v895, %v917
        %926 = vst [vmem:[#allocation2 + $0xc0] sm:$0xf] %v922
        %927 = vst [vmem:[#allocation2 + $0xc8] sm:$0xf] %v923
        %928 = vst [vmem:[#allocation2 + $0xd0] sm:$0xf] %v924
        %929 = vst [vmem:[#allocation2 + $0xd8] sm:$0xf] %v925
        %v930 = vcombine.low %v277, %v277
        %v931 = vcombine.low %v278, %v278
        %934 = vst [vmem:[#allocation2 + $0xc0] sm:$0xf0] %v930
        %935 = vst [vmem:[#allocation2 + $0xc8] sm:$0xf0] %v277
        %936 = vst [vmem:[#allocation2 + $0xd0] sm:$0xf0] %v931
        %937 = vst [vmem:[#allocation2 + $0xd8] sm:$0xf0] %v278
        %938 = vrot.lane.b32.xlu0 %v277, 127
        %v939 = vpop.permute.xlu0 %938
        %940 = vrot.lane.b32.xlu0 %v281, 127
        %v941 = vpop.permute.xlu0 %940
        %942 = vrot.lane.b32.xlu0 %v278, 127
        %v943 = vpop.permute.xlu0 %942
        %944 = vrot.lane.b32.xlu0 %v282, 127
        %v945 = vpop.permute.xlu0 %944
        %vm946 = vcmp.lt.s32.totalorder %v294, 127
        %v947 = vsel %vm946, %v943, %v945
        %v948 = vsel %vm946, %v941, %v943
        %v949 = vsel %vm946, %v939, %v941
        %v950 = vsel %vm946, %v945, %v939
        %s951 = scalar_lea.vmem [#allocation8], 38
        %v952 = vld [vmem:[%s951] ss:$8 sm:$0xf]
        %v954 = vlaneseq
        %v955 = vshrl.u32 %v954, 7
        %v956 = vsub.s32 0, %v955
        %v957 = vrot.slane %v952, %v956
        %v958 = vlaneseq
        %v959 = vshrl.u32 %v958, 7
        %v960 = vsub.s32 1, %v959
        %v961 = vrot.slane %v952, %v960
        %v962 = vlaneseq
        %v963 = vshrl.u32 %v962, 7
        %v964 = vsub.s32 2, %v963
        %v965 = vrot.slane %v952, %v964
        %v966 = vlaneseq
        %v967 = vshrl.u32 %v966, 7
        %v968 = vsub.s32 3, %v967
        %v969 = vrot.slane %v952, %v968
        %v974 = vmul.f32 %v949, %v957
        %v975 = vmul.f32 %v948, %v961
        %v976 = vmul.f32 %v947, %v965
        %v977 = vmul.f32 %v950, %v969
        %978 = vst [vmem:[#allocation2 + $0xe0] sm:$0xf] %v974
        %979 = vst [vmem:[#allocation2 + $0xe8] sm:$0xf] %v975
        %980 = vst [vmem:[#allocation2 + $0xf0] sm:$0xf] %v976
        %981 = vst [vmem:[#allocation2 + $0xf8] sm:$0xf] %v977
        %982 = vrot.lane.b32.xlu0 %v277, 121
        %v983 = vpop.permute.xlu0 %982
        %984 = vrot.lane.b32.xlu0 %v281, 121
        %v985 = vpop.permute.xlu0 %984
        %986 = vrot.lane.b32.xlu0 %v278, 121
        %v987 = vpop.permute.xlu0 %986
        %988 = vrot.lane.b32.xlu0 %v282, 121
        %v989 = vpop.permute.xlu0 %988
        %vm990 = vcmp.lt.s32.totalorder %v294, 121
        %v991 = vsel %vm990, %v987, %v989
        %v992 = vsel %vm990, %v985, %v987
        %v993 = vsel %vm990, %v983, %v985
        %v994 = vsel %vm990, %v989, %v983
        %s995 = scalar_lea.vmem [#allocation8], 39
        %v996 = vld [vmem:[%s995] ss:$8 sm:$0xf]
        %v998 = vlaneseq
        %v999 = vshrl.u32 %v998, 7
        %v1000 = vsub.s32 0, %v999
        %v1001 = vrot.slane %v996, %v1000
        %v1002 = vlaneseq
        %v1003 = vshrl.u32 %v1002, 7
        %v1004 = vsub.s32 1, %v1003
        %v1005 = vrot.slane %v996, %v1004
        %v1006 = vlaneseq
        %v1007 = vshrl.u32 %v1006, 7
        %v1008 = vsub.s32 2, %v1007
        %v1009 = vrot.slane %v996, %v1008
        %v1010 = vlaneseq
        %v1011 = vshrl.u32 %v1010, 7
        %v1012 = vsub.s32 3, %v1011
        %v1013 = vrot.slane %v996, %v1012
        %v1018 = vmul.f32 %v993, %v1001
        %v1019 = vmul.f32 %v992, %v1005
        %v1020 = vmul.f32 %v991, %v1009
        %v1021 = vmul.f32 %v994, %v1013
        %v1026 = vrot.slane %v1018, 4
        %v1027 = vrot.slane %v1019, 4
        %v1028 = vrot.slane %v1020, 4
        %v1029 = vrot.slane %v1021, 4
        %1034 = vst [vmem:[#allocation2 + $0xe0] sm:$0xf0] %v1026
        %1035 = vst [vmem:[#allocation2 + $0xe8] sm:$0xf0] %v1027
        %1036 = vst [vmem:[#allocation2 + $0xf0] sm:$0xf0] %v1028
        %1037 = vst [vmem:[#allocation2 + $0xf8] sm:$0xf0] %v1029
        %1038 = vrot.lane.b32.xlu0 %v277, 120
        %v1039 = vpop.permute.xlu0 %1038
        %1040 = vrot.lane.b32.xlu0 %v281, 120
        %v1041 = vpop.permute.xlu0 %1040
        %1042 = vrot.lane.b32.xlu0 %v278, 120
        %v1043 = vpop.permute.xlu0 %1042
        %1044 = vrot.lane.b32.xlu0 %v282, 120
        %v1045 = vpop.permute.xlu0 %1044
        %vm1046 = vcmp.lt.s32.totalorder %v294, 120
        %v1047 = vsel %vm1046, %v1043, %v1045
        %v1048 = vsel %vm1046, %v1041, %v1043
        %v1049 = vsel %vm1046, %v1039, %v1041
        %v1050 = vsel %vm1046, %v1045, %v1039
        %s1051 = scalar_lea.vmem [#allocation8], 64
        %v1052 = vld [vmem:[%s1051] ss:$8 sm:$0xf]
        %v1054 = vlaneseq
        %v1055 = vshrl.u32 %v1054, 7
        %v1056 = vsub.s32 0, %v1055
        %v1057 = vrot.slane %v1052, %v1056
        %v1058 = vlaneseq
        %v1059 = vshrl.u32 %v1058, 7
        %v1060 = vsub.s32 1, %v1059
        %v1061 = vrot.slane %v1052, %v1060
        %v1062 = vlaneseq
        %v1063 = vshrl.u32 %v1062, 7
        %v1064 = vsub.s32 2, %v1063
        %v1065 = vrot.slane %v1052, %v1064
        %v1066 = vlaneseq
        %v1067 = vshrl.u32 %v1066, 7
        %v1068 = vsub.s32 3, %v1067
        %v1069 = vrot.slane %v1052, %v1068
        %v1074 = vmul.f32 %v1049, %v1057
        %v1075 = vmul.f32 %v1048, %v1061
        %v1076 = vmul.f32 %v1047, %v1065
        %v1077 = vmul.f32 %v1050, %v1069
        %1078 = vst [vmem:[#allocation2 + $0x100] sm:$0xf] %v1074
        %1079 = vst [vmem:[#allocation2 + $0x108] sm:$0xf] %v1075
        %1080 = vst [vmem:[#allocation2 + $0x110] sm:$0xf] %v1076
        %1081 = vst [vmem:[#allocation2 + $0x118] sm:$0xf] %v1077
        %1082 = vrot.lane.b32.xlu0 %v277, 119
        %v1083 = vpop.permute.xlu0 %1082
        %1084 = vrot.lane.b32.xlu0 %v281, 119
        %v1085 = vpop.permute.xlu0 %1084
        %1086 = vrot.lane.b32.xlu0 %v278, 119
        %v1087 = vpop.permute.xlu0 %1086
        %1088 = vrot.lane.b32.xlu0 %v282, 119
        %v1089 = vpop.permute.xlu0 %1088
        %vm1090 = vcmp.lt.s32.totalorder %v294, 119
        %v1091 = vsel %vm1090, %v1087, %v1089
        %v1092 = vsel %vm1090, %v1085, %v1087
        %v1093 = vsel %vm1090, %v1083, %v1085
        %v1094 = vsel %vm1090, %v1089, %v1083
        %s1095 = scalar_lea.vmem [#allocation8], 65
        %v1096 = vld [vmem:[%s1095] ss:$8 sm:$0xf]
        %v1098 = vlaneseq
        %v1099 = vshrl.u32 %v1098, 7
        %v1100 = vsub.s32 0, %v1099
        %v1101 = vrot.slane %v1096, %v1100
        %v1102 = vlaneseq
        %v1103 = vshrl.u32 %v1102, 7
        %v1104 = vsub.s32 1, %v1103
        %v1105 = vrot.slane %v1096, %v1104
        %v1106 = vlaneseq
        %v1107 = vshrl.u32 %v1106, 7
        %v1108 = vsub.s32 2, %v1107
        %v1109 = vrot.slane %v1096, %v1108
        %v1110 = vlaneseq
        %v1111 = vshrl.u32 %v1110, 7
        %v1112 = vsub.s32 3, %v1111
        %v1113 = vrot.slane %v1096, %v1112
        %v1118 = vmul.f32 %v1093, %v1101
        %v1119 = vmul.f32 %v1092, %v1105
        %v1120 = vmul.f32 %v1091, %v1109
        %v1121 = vmul.f32 %v1094, %v1113
        %v1126 = vrot.slane %v1118, 4
        %v1127 = vrot.slane %v1119, 4
        %v1128 = vrot.slane %v1120, 4
        %v1129 = vrot.slane %v1121, 4
        %1134 = vst [vmem:[#allocation2 + $0x100] sm:$0xf0] %v1126
        %1135 = vst [vmem:[#allocation2 + $0x108] sm:$0xf0] %v1127
        %1136 = vst [vmem:[#allocation2 + $0x110] sm:$0xf0] %v1128
        %1137 = vst [vmem:[#allocation2 + $0x118] sm:$0xf0] %v1129
        %s1138 = scalar_lea.vmem [#allocation8], 66
        %v1139 = vld [vmem:[%s1138] ss:$8 sm:$0xf]
        %v1141 = vlaneseq
        %v1142 = vshrl.u32 %v1141, 7
        %v1143 = vsub.s32 0, %v1142
        %v1144 = vrot.slane %v1139, %v1143
        %v1145 = vlaneseq
        %v1146 = vshrl.u32 %v1145, 7
        %v1147 = vsub.s32 1, %v1146
        %v1148 = vrot.slane %v1139, %v1147
        %v1149 = vlaneseq
        %v1150 = vshrl.u32 %v1149, 7
        %v1151 = vsub.s32 2, %v1150
        %v1152 = vrot.slane %v1139, %v1151
        %v1153 = vlaneseq
        %v1154 = vshrl.u32 %v1153, 7
        %v1155 = vsub.s32 3, %v1154
        %v1156 = vrot.slane %v1139, %v1155
        %v1161 = vmul.f32 %v298, %v1144
        %v1162 = vmul.f32 %v297, %v1148
        %v1163 = vmul.f32 %v296, %v1152
        %v1164 = vmul.f32 %v299, %v1156
        %1165 = vst [vmem:[#allocation2 + $0x120] sm:$0xf] %v1161
        %1166 = vst [vmem:[#allocation2 + $0x128] sm:$0xf] %v1162
        %1167 = vst [vmem:[#allocation2 + $0x130] sm:$0xf] %v1163
        %1168 = vst [vmem:[#allocation2 + $0x138] sm:$0xf] %v1164
        %s1169 = scalar_lea.vmem [#allocation8], 67
        %v1170 = vld [vmem:[%s1169] ss:$8 sm:$0xf]
        %v1172 = vlaneseq
        %v1173 = vshrl.u32 %v1172, 7
        %v1174 = vsub.s32 0, %v1173
        %v1175 = vrot.slane %v1170, %v1174
        %v1176 = vlaneseq
        %v1177 = vshrl.u32 %v1176, 7
        %v1178 = vsub.s32 1, %v1177
        %v1179 = vrot.slane %v1170, %v1178
        %v1180 = vlaneseq
        %v1181 = vshrl.u32 %v1180, 7
        %v1182 = vsub.s32 2, %v1181
        %v1183 = vrot.slane %v1170, %v1182
        %v1184 = vlaneseq
        %v1185 = vshrl.u32 %v1184, 7
        %v1186 = vsub.s32 3, %v1185
        %v1187 = vrot.slane %v1170, %v1186
        %v1192 = vmul.f32 %v341, %v1175
        %v1193 = vmul.f32 %v340, %v1179
        %v1194 = vmul.f32 %v339, %v1183
        %v1195 = vmul.f32 %v342, %v1187
        %v1200 = vrot.slane %v1192, 4
        %v1201 = vrot.slane %v1193, 4
        %v1202 = vrot.slane %v1194, 4
        %v1203 = vrot.slane %v1195, 4
        %1208 = vst [vmem:[#allocation2 + $0x120] sm:$0xf0] %v1200
        %1209 = vst [vmem:[#allocation2 + $0x128] sm:$0xf0] %v1201
        %1210 = vst [vmem:[#allocation2 + $0x130] sm:$0xf0] %v1202
        %1211 = vst [vmem:[#allocation2 + $0x138] sm:$0xf0] %v1203
        %s1212 = scalar_lea.vmem [#allocation8], 68
        %v1213 = vld [vmem:[%s1212] ss:$8 sm:$0xf]
        %v1215 = vlaneseq
        %v1216 = vshrl.u32 %v1215, 7
        %v1217 = vsub.s32 0, %v1216
        %v1218 = vrot.slane %v1213, %v1217
        %v1219 = vlaneseq
        %v1220 = vshrl.u32 %v1219, 7
        %v1221 = vsub.s32 1, %v1220
        %v1222 = vrot.slane %v1213, %v1221
        %v1223 = vlaneseq
        %v1224 = vshrl.u32 %v1223, 7
        %v1225 = vsub.s32 2, %v1224
        %v1226 = vrot.slane %v1213, %v1225
        %v1227 = vlaneseq
        %v1228 = vshrl.u32 %v1227, 7
        %v1229 = vsub.s32 3, %v1228
        %v1230 = vrot.slane %v1213, %v1229
        %v1235 = vmul.f32 %v397, %v1218
        %v1236 = vmul.f32 %v396, %v1222
        %v1237 = vmul.f32 %v395, %v1226
        %v1238 = vmul.f32 %v398, %v1230
        %1239 = vst [vmem:[#allocation2 + $0x140] sm:$0xf] %v1235
        %1240 = vst [vmem:[#allocation2 + $0x148] sm:$0xf] %v1236
        %1241 = vst [vmem:[#allocation2 + $0x150] sm:$0xf] %v1237
        %1242 = vst [vmem:[#allocation2 + $0x158] sm:$0xf] %v1238
        %s1243 = scalar_lea.vmem [#allocation8], 69
        %v1244 = vld [vmem:[%s1243] ss:$8 sm:$0xf]
        %v1246 = vlaneseq
        %v1247 = vshrl.u32 %v1246, 7
        %v1248 = vsub.s32 0, %v1247
        %v1249 = vrot.slane %v1244, %v1248
        %v1250 = vlaneseq
        %v1251 = vshrl.u32 %v1250, 7
        %v1252 = vsub.s32 1, %v1251
        %v1253 = vrot.slane %v1244, %v1252
        %v1254 = vlaneseq
        %v1255 = vshrl.u32 %v1254, 7
        %v1256 = vsub.s32 2, %v1255
        %v1257 = vrot.slane %v1244, %v1256
        %v1258 = vlaneseq
        %v1259 = vshrl.u32 %v1258, 7
        %v1260 = vsub.s32 3, %v1259
        %v1261 = vrot.slane %v1244, %v1260
        %v1266 = vmul.f32 %v441, %v1249
        %v1267 = vmul.f32 %v440, %v1253
        %v1268 = vmul.f32 %v439, %v1257
        %v1269 = vmul.f32 %v442, %v1261
        %v1274 = vrot.slane %v1266, 4
        %v1275 = vrot.slane %v1267, 4
        %v1276 = vrot.slane %v1268, 4
        %v1277 = vrot.slane %v1269, 4
        %1282 = vst [vmem:[#allocation2 + $0x140] sm:$0xf0] %v1274
        %1283 = vst [vmem:[#allocation2 + $0x148] sm:$0xf0] %v1275
        %1284 = vst [vmem:[#allocation2 + $0x150] sm:$0xf0] %v1276
        %1285 = vst [vmem:[#allocation2 + $0x158] sm:$0xf0] %v1277
        %s1286 = scalar_lea.vmem [#allocation8], 70
        %v1287 = vld [vmem:[%s1286] ss:$8 sm:$0xf]
        %v1289 = vlaneseq
        %v1290 = vshrl.u32 %v1289, 7
        %v1291 = vsub.s32 0, %v1290
        %v1292 = vrot.slane %v1287, %v1291
        %v1293 = vlaneseq
        %v1294 = vshrl.u32 %v1293, 7
        %v1295 = vsub.s32 1, %v1294
        %v1296 = vrot.slane %v1287, %v1295
        %v1297 = vlaneseq
        %v1298 = vshrl.u32 %v1297, 7
        %v1299 = vsub.s32 2, %v1298
        %v1300 = vrot.slane %v1287, %v1299
        %v1301 = vlaneseq
        %v1302 = vshrl.u32 %v1301, 7
        %v1303 = vsub.s32 3, %v1302
        %v1304 = vrot.slane %v1287, %v1303
        %v1309 = vmul.f32 %v497, %v1292
        %v1310 = vmul.f32 %v496, %v1296
        %v1311 = vmul.f32 %v495, %v1300
        %v1312 = vmul.f32 %v498, %v1304
        %1313 = vst [vmem:[#allocation2 + $0x160] sm:$0xf] %v1309
        %1314 = vst [vmem:[#allocation2 + $0x168] sm:$0xf] %v1310
        %1315 = vst [vmem:[#allocation2 + $0x170] sm:$0xf] %v1311
        %1316 = vst [vmem:[#allocation2 + $0x178] sm:$0xf] %v1312
        %s1317 = scalar_lea.vmem [#allocation8], 71
        %v1318 = vld [vmem:[%s1317] ss:$8 sm:$0xf]
        %v1320 = vlaneseq
        %v1321 = vshrl.u32 %v1320, 7
        %v1322 = vsub.s32 0, %v1321
        %v1323 = vrot.slane %v1318, %v1322
        %v1324 = vlaneseq
        %v1325 = vshrl.u32 %v1324, 7
        %v1326 = vsub.s32 1, %v1325
        %v1327 = vrot.slane %v1318, %v1326
        %v1328 = vlaneseq
        %v1329 = vshrl.u32 %v1328, 7
        %v1330 = vsub.s32 2, %v1329
        %v1331 = vrot.slane %v1318, %v1330
        %v1332 = vlaneseq
        %v1333 = vshrl.u32 %v1332, 7
        %v1334 = vsub.s32 3, %v1333
        %v1335 = vrot.slane %v1318, %v1334
        %v1340 = vmul.f32 %v541, %v1323
        %v1341 = vmul.f32 %v540, %v1327
        %v1342 = vmul.f32 %v539, %v1331
        %v1343 = vmul.f32 %v542, %v1335
        %v1348 = vrot.slane %v1340, 4
        %v1349 = vrot.slane %v1341, 4
        %v1350 = vrot.slane %v1342, 4
        %v1351 = vrot.slane %v1343, 4
        %1356 = vst [vmem:[#allocation2 + $0x160] sm:$0xf0] %v1348
        %1357 = vst [vmem:[#allocation2 + $0x168] sm:$0xf0] %v1349
        %1358 = vst [vmem:[#allocation2 + $0x170] sm:$0xf0] %v1350
        %1359 = vst [vmem:[#allocation2 + $0x178] sm:$0xf0] %v1351
        %s1360 = scalar_lea.vmem [#allocation8], 96
        %v1361 = vld [vmem:[%s1360] ss:$8 sm:$0xf]
        %v1363 = vlaneseq
        %v1364 = vshrl.u32 %v1363, 7
        %v1365 = vsub.s32 0, %v1364
        %v1366 = vrot.slane %v1361, %v1365
        %v1367 = vlaneseq
        %v1368 = vshrl.u32 %v1367, 7
        %v1369 = vsub.s32 1, %v1368
        %v1370 = vrot.slane %v1361, %v1369
        %v1371 = vlaneseq
        %v1372 = vshrl.u32 %v1371, 7
        %v1373 = vsub.s32 2, %v1372
        %v1374 = vrot.slane %v1361, %v1373
        %v1375 = vlaneseq
        %v1376 = vshrl.u32 %v1375, 7
        %v1377 = vsub.s32 3, %v1376
        %v1378 = vrot.slane %v1361, %v1377
        %v1383 = vmul.f32 %v597, %v1366
        %v1384 = vmul.f32 %v596, %v1370
        %v1385 = vmul.f32 %v595, %v1374
        %v1386 = vmul.f32 %v598, %v1378
        %1387 = vst [vmem:[#allocation2 + $0x180] sm:$0xf] %v1383
        %1388 = vst [vmem:[#allocation2 + $0x188] sm:$0xf] %v1384
        %1389 = vst [vmem:[#allocation2 + $0x190] sm:$0xf] %v1385
        %1390 = vst [vmem:[#allocation2 + $0x198] sm:$0xf] %v1386
        %s1391 = scalar_lea.vmem [#allocation8], 97
        %v1392 = vld [vmem:[%s1391] ss:$8 sm:$0xf]
        %v1394 = vlaneseq
        %v1395 = vshrl.u32 %v1394, 7
        %v1396 = vsub.s32 0, %v1395
        %v1397 = vrot.slane %v1392, %v1396
        %v1398 = vlaneseq
        %v1399 = vshrl.u32 %v1398, 7
        %v1400 = vsub.s32 1, %v1399
        %v1401 = vrot.slane %v1392, %v1400
        %v1402 = vlaneseq
        %v1403 = vshrl.u32 %v1402, 7
        %v1404 = vsub.s32 2, %v1403
        %v1405 = vrot.slane %v1392, %v1404
        %v1406 = vlaneseq
        %v1407 = vshrl.u32 %v1406, 7
        %v1408 = vsub.s32 3, %v1407
        %v1409 = vrot.slane %v1392, %v1408
        %v1414 = vmul.f32 %v641, %v1397
        %v1415 = vmul.f32 %v640, %v1401
        %v1416 = vmul.f32 %v639, %v1405
        %v1417 = vmul.f32 %v642, %v1409
        %v1422 = vrot.slane %v1414, 4
        %v1423 = vrot.slane %v1415, 4
        %v1424 = vrot.slane %v1416, 4
        %v1425 = vrot.slane %v1417, 4
        %1430 = vst [vmem:[#allocation2 + $0x180] sm:$0xf0] %v1422
        %1431 = vst [vmem:[#allocation2 + $0x188] sm:$0xf0] %v1423
        %1432 = vst [vmem:[#allocation2 + $0x190] sm:$0xf0] %v1424
        %1433 = vst [vmem:[#allocation2 + $0x198] sm:$0xf0] %v1425
        %s1434 = scalar_lea.vmem [#allocation8], 98
        %v1435 = vld [vmem:[%s1434] ss:$8 sm:$0xf]
        %v1437 = vlaneseq
        %v1438 = vshrl.u32 %v1437, 7
        %v1439 = vsub.s32 0, %v1438
        %v1440 = vrot.slane %v1435, %v1439
        %v1441 = vlaneseq
        %v1442 = vshrl.u32 %v1441, 7
        %v1443 = vsub.s32 1, %v1442
        %v1444 = vrot.slane %v1435, %v1443
        %v1445 = vlaneseq
        %v1446 = vshrl.u32 %v1445, 7
        %v1447 = vsub.s32 2, %v1446
        %v1448 = vrot.slane %v1435, %v1447
        %v1449 = vlaneseq
        %v1450 = vshrl.u32 %v1449, 7
        %v1451 = vsub.s32 3, %v1450
        %v1452 = vrot.slane %v1435, %v1451
        %v1457 = vmul.f32 %v697, %v1440
        %v1458 = vmul.f32 %v696, %v1444
        %v1459 = vmul.f32 %v695, %v1448
        %v1460 = vmul.f32 %v698, %v1452
        %1461 = vst [vmem:[#allocation2 + $0x1a0] sm:$0xf] %v1457
        %1462 = vst [vmem:[#allocation2 + $0x1a8] sm:$0xf] %v1458
        %1463 = vst [vmem:[#allocation2 + $0x1b0] sm:$0xf] %v1459
        %1464 = vst [vmem:[#allocation2 + $0x1b8] sm:$0xf] %v1460
        %v1465 = vld [vmem:[#allocation6] sm:$0xff]
        %v1466 = vld [vmem:[#allocation2] sm:$0xff]
        %v1467 = vld [vmem:[#allocation2 + $0x8] sm:$0xff]
        %v1468 = vld [vmem:[#allocation2 + $0x10] sm:$0xff]
        %v1469 = vld [vmem:[#allocation2 + $0x18] sm:$0xff]
        %v1470 = vld [vmem:[#allocation2 + $0x20] sm:$0xff]
        %v1471 = vld [vmem:[#allocation2 + $0x28] sm:$0xff]
        %v1472 = vld [vmem:[#allocation2 + $0x30] sm:$0xff]
        %v1473 = vld [vmem:[#allocation2 + $0x38] sm:$0xff]
        %v1474 = vld [vmem:[#allocation2 + $0x40] sm:$0xff]
        %v1475 = vld [vmem:[#allocation2 + $0x48] sm:$0xff]
        %v1476 = vld [vmem:[#allocation2 + $0x50] sm:$0xff]
        %v1477 = vld [vmem:[#allocation2 + $0x58] sm:$0xff]
        %v1478 = vld [vmem:[#allocation2 + $0x60] sm:$0xff]
        %v1479 = vld [vmem:[#allocation2 + $0x68] sm:$0xff]
        %v1480 = vld [vmem:[#allocation2 + $0x70] sm:$0xff]
        %v1481 = vld [vmem:[#allocation2 + $0x78] sm:$0xff]
        %v1482 = vld [vmem:[#allocation2 + $0x80] sm:$0xff]
        %v1483 = vld [vmem:[#allocation2 + $0x88] sm:$0xff]
        %v1484 = vld [vmem:[#allocation2 + $0x90] sm:$0xff]
        %v1485 = vld [vmem:[#allocation2 + $0x98] sm:$0xff]
        %v1486 = vld [vmem:[#allocation2 + $0xa0] sm:$0xff]
        %v1487 = vld [vmem:[#allocation2 + $0xa8] sm:$0xff]
        %v1488 = vld [vmem:[#allocation2 + $0xb0] sm:$0xff]
        %v1489 = vld [vmem:[#allocation2 + $0xb8] sm:$0xff]
        %v1490 = vld [vmem:[#allocation2 + $0xc0] sm:$0xff]
        %v1491 = vld [vmem:[#allocation2 + $0xc8] sm:$0xff]
        %v1492 = vld [vmem:[#allocation2 + $0xd0] sm:$0xff]
        %v1493 = vld [vmem:[#allocation2 + $0xd8] sm:$0xff]
        %v1494 = vld [vmem:[#allocation2 + $0xe0] sm:$0xff]
        %v1495 = vld [vmem:[#allocation2 + $0xe8] sm:$0xff]
        %v1496 = vld [vmem:[#allocation2 + $0xf0] sm:$0xff]
        %v1497 = vld [vmem:[#allocation2 + $0xf8] sm:$0xff]
        %v1498 = vld [vmem:[#allocation2 + $0x100] sm:$0xff]
        %v1499 = vld [vmem:[#allocation2 + $0x108] sm:$0xff]
        %v1500 = vld [vmem:[#allocation2 + $0x110] sm:$0xff]
        %v1501 = vld [vmem:[#allocation2 + $0x118] sm:$0xff]
        %v1502 = vld [vmem:[#allocation2 + $0x120] sm:$0xff]
        %v1503 = vld [vmem:[#allocation2 + $0x128] sm:$0xff]
        %v1504 = vld [vmem:[#allocation2 + $0x130] sm:$0xff]
        %v1505 = vld [vmem:[#allocation2 + $0x138] sm:$0xff]
        %v1506 = vld [vmem:[#allocation2 + $0x140] sm:$0xff]
        %v1507 = vld [vmem:[#allocation2 + $0x148] sm:$0xff]
        %v1508 = vld [vmem:[#allocation2 + $0x150] sm:$0xff]
        %v1509 = vld [vmem:[#allocation2 + $0x158] sm:$0xff]
        %v1510 = vld [vmem:[#allocation2 + $0x160] sm:$0xff]
        %v1511 = vld [vmem:[#allocation2 + $0x168] sm:$0xff]
        %v1512 = vld [vmem:[#allocation2 + $0x170] sm:$0xff]
        %v1513 = vld [vmem:[#allocation2 + $0x178] sm:$0xff]
        %v1514 = vld [vmem:[#allocation2 + $0x180] sm:$0xff]
        %v1515 = vld [vmem:[#allocation2 + $0x188] sm:$0xff]
        %v1516 = vld [vmem:[#allocation2 + $0x190] sm:$0xff]
        %v1517 = vld [vmem:[#allocation2 + $0x198] sm:$0xff]
        %v1518 = vld [vmem:[#allocation2 + $0x1a0] sm:$0xf]
        %v1519 = vld [vmem:[#allocation2 + $0x1a8] sm:$0xf]
        %v1520 = vld [vmem:[#allocation2 + $0x1b0] sm:$0xf]
        %v1521 = vld [vmem:[#allocation2 + $0x1b8] sm:$0xf]
        %vm1522 = vcmask 883712
        %v1524 = vsel %vm1522, %v1465, 0
        %v1527 = vsel %vm222, %v1518, 0
        %v1530 = vsel %vm222, %v1519, 0
        %v1533 = vsel %vm222, %v1520, 0
        %v1536 = vsel %vm222, %v1521, 0
        %1538 = vmatprep.subr.mxu0 %v1467
        %1539 = vmatpush1.msra.mxu0 %v1466
        %1540 = vmatprep.subr.mxu0 %v1471
        %1541 = vmatpush1.msra.mxu0 %v1470
        %1542 = vmatprep.subr.mxu0 %v1475
        %1543 = vmatpush1.msra.mxu0 %v1474
        %1544 = vmatprep.subr.mxu0 %v1479
        %1545 = vmatpush1.msra.mxu0 %v1478
        %1546 = vmatprep.subr.mxu0 %v1483
        %1547 = vmatpush1.msra.mxu0 %v1482
        %1548 = vmatprep.subr.mxu0 %v1487
        %1549 = vmatpush1.msra.mxu0 %v1486
        %1550 = vmatprep.subr.mxu0 %v1491
        %1551 = vmatpush1.msra.mxu0 %v1490
        %1552 = vmatprep.subr.mxu0 %v1495
        %1553 = vmatpush1.msra.mxu0 %v1494
        %1554 = vmatprep.subr.mxu0 %v1499
        %1555 = vmatpush1.msra.mxu0 %v1498
        %1556 = vmatprep.subr.mxu0 %v1503
        %1557 = vmatpush1.msra.mxu0 %v1502
        %1558 = vmatprep.subr.mxu0 %v1507
        %1559 = vmatpush1.msra.mxu0 %v1506
        %1560 = vmatprep.subr.mxu0 %v1511
        %1561 = vmatpush1.msra.mxu0 %v1510
        %1562 = vmatprep.subr.mxu0 %v1515
        %1563 = vmatpush1.msra.mxu0 %v1514
        %1564 = vmatprep.subr.mxu0 %v1530
        %1565 = vmatpush1.msra.mxu0 %v1527
        %1566 = vmatprep.subr.mxu0 0.0
        %1567 = vmatpush1.msra.mxu0 0.0
        %1568 = vmatprep.subr.mxu0 0.0
        %1569 = vmatpush1.msra.mxu0 0.0
        %1570 = vmatprep.subr.mxu0 0.0
        %1571 = vmatpush1.msra.mxu0 0.0
        %1572 = vmatprep.subr.mxu0 0.0
        %1573 = vmatpush1.msra.mxu0 0.0
        %1574 = vmatprep.subr.mxu0 0.0
        %1575 = vmatpush1.msra.mxu0 0.0
        %1576 = vmatprep.subr.mxu0 0.0
        %1577 = vmatpush1.msra.mxu0 0.0
        %1578 = vmatprep.subr.mxu0 0.0
        %1579 = vmatpush1.msra.mxu0 0.0
        %1580 = vmatprep.subr.mxu0 0.0
        %1581 = vmatpush1.msra.mxu0 0.0
        %1582 = vmatprep.subr.mxu0 0.0
        %1583 = vmatpush1.msra.mxu0 0.0
        %1584 = vmatprep.subr.mxu0 0.0
        %1585 = vmatpush1.msra.mxu0 0.0
        %1586 = vmatprep.subr.mxu0 0.0
        %1587 = vmatpush1.msra.mxu0 0.0
        %1588 = vmatprep.subr.mxu0 0.0
        %1589 = vmatpush1.msra.mxu0 0.0
        %1590 = vmatprep.subr.mxu0 0.0
        %1591 = vmatpush1.msra.mxu0 0.0
        %1592 = vmatprep.subr.mxu0 0.0
        %1593 = vmatpush1.msra.mxu0 0.0
        %1594 = vmatprep.subr.mxu0 0.0
        %1595 = vmatpush1.msra.mxu0 0.0
        %1596 = vmatprep.subr.mxu0 0.0
        %1597 = vmatpush1.msra.mxu0 0.0
        %1598 = vmatprep.subr.mxu0 0.0
        %1599 = vmatpush1.msra.mxu0 0.0
        %1600 = vmatprep.subr.mxu0 0.0
        %1601 = vmatpush1.msra.mxu0 0.0
        %1602 = vmatprep.mubr.f32.mxu0 0.0
        %1603 = vmatmul.mubr.f32.gmra.mrb[0].mxu0 %v1524
        %v1604 = vpop.f32.mrb[0].mxu0
        %v1605 = vadd.f32 0.0, %v1604
        %v1606 = vpop.f32.mrb[0].mxu0
        %v1607 = vadd.f32 0.0, %v1606
        %1608 = vdwg.mxu0
        %1609 = vmatprep.subr.mxu0 %v1469
        %1610 = vmatpush1.msra.mxu0 %v1468
        %1611 = vmatprep.subr.mxu0 %v1473
        %1612 = vmatpush1.msra.mxu0 %v1472
        %1613 = vmatprep.subr.mxu0 %v1477
        %1614 = vmatpush1.msra.mxu0 %v1476
        %1615 = vmatprep.subr.mxu0 %v1481
        %1616 = vmatpush1.msra.mxu0 %v1480
        %1617 = vmatprep.subr.mxu0 %v1485
        %1618 = vmatpush1.msra.mxu0 %v1484
        %1619 = vmatprep.subr.mxu0 %v1489
        %1620 = vmatpush1.msra.mxu0 %v1488
        %1621 = vmatprep.subr.mxu0 %v1493
        %1622 = vmatpush1.msra.mxu0 %v1492
        %1623 = vmatprep.subr.mxu0 %v1497
        %1624 = vmatpush1.msra.mxu0 %v1496
        %1625 = vmatprep.subr.mxu0 %v1501
        %1626 = vmatpush1.msra.mxu0 %v1500
        %1627 = vmatprep.subr.mxu0 %v1505
        %1628 = vmatpush1.msra.mxu0 %v1504
        %1629 = vmatprep.subr.mxu0 %v1509
        %1630 = vmatpush1.msra.mxu0 %v1508
        %1631 = vmatprep.subr.mxu0 %v1513
        %1632 = vmatpush1.msra.mxu0 %v1512
        %1633 = vmatprep.subr.mxu0 %v1517
        %1634 = vmatpush1.msra.mxu0 %v1516
        %1635 = vmatprep.subr.mxu0 %v1536
        %1636 = vmatpush1.msra.mxu0 %v1533
        %1637 = vmatprep.subr.mxu0 0.0
        %1638 = vmatpush1.msra.mxu0 0.0
        %1639 = vmatprep.subr.mxu0 0.0
        %1640 = vmatpush1.msra.mxu0 0.0
        %1641 = vmatprep.subr.mxu0 0.0
        %1642 = vmatpush1.msra.mxu0 0.0
        %1643 = vmatprep.subr.mxu0 0.0
        %1644 = vmatpush1.msra.mxu0 0.0
        %1645 = vmatprep.subr.mxu0 0.0
        %1646 = vmatpush1.msra.mxu0 0.0
        %1647 = vmatprep.subr.mxu0 0.0
        %1648 = vmatpush1.msra.mxu0 0.0
        %1649 = vmatprep.subr.mxu0 0.0
        %1650 = vmatpush1.msra.mxu0 0.0
        %1651 = vmatprep.subr.mxu0 0.0
        %1652 = vmatpush1.msra.mxu0 0.0
        %1653 = vmatprep.subr.mxu0 0.0
        %1654 = vmatpush1.msra.mxu0 0.0
        %1655 = vmatprep.subr.mxu0 0.0
        %1656 = vmatpush1.msra.mxu0 0.0
        %1657 = vmatprep.subr.mxu0 0.0
        %1658 = vmatpush1.msra.mxu0 0.0
        %1659 = vmatprep.subr.mxu0 0.0
        %1660 = vmatpush1.msra.mxu0 0.0
        %1661 = vmatprep.subr.mxu0 0.0
        %1662 = vmatpush1.msra.mxu0 0.0
        %1663 = vmatprep.subr.mxu0 0.0
        %1664 = vmatpush1.msra.mxu0 0.0
        %1665 = vmatprep.subr.mxu0 0.0
        %1666 = vmatpush1.msra.mxu0 0.0
        %1667 = vmatprep.subr.mxu0 0.0
        %1668 = vmatpush1.msra.mxu0 0.0
        %1669 = vmatprep.subr.mxu0 0.0
        %1670 = vmatpush1.msra.mxu0 0.0
        %1671 = vmatprep.subr.mxu0 0.0
        %1672 = vmatpush1.msra.mxu0 0.0
        %1673 = vmatprep.mubr.f32.mxu0 0.0
        %1674 = vmatmul.mubr.f32.gmra.mrb[0].mxu0 %v1524
        %v1675 = vpop.f32.mrb[0].mxu0
        %v1676 = vadd.f32 0.0, %v1675
        %v1677 = vpop.f32.mrb[0].mxu0
        %v1678 = vadd.f32 0.0, %v1677
        %1679 = vdwg.mxu0
        %1680 = vst [vmem:[%s213] sm:$0xff] %v1605
        %1681 = vst [vmem:[%s213 + $0x8] sm:$0xff] %v1607
        %1682 = vst [vmem:[%s213 + $0x10] sm:$0xff] %v1676
        %1683 = vst [vmem:[%s213 + $0x18] sm:$0xff] %v1678
        %s1684 = sand.u32 %s97, 1
        %s1685 = scalar_lea.sflag [#allocation5], %s1684
        %s1686 = sand.u32 %s97, 1
        %s1687 = smul.addr %s1686, 32
        %s1688 = scalar_lea.vmem [#allocation9], %s1687
        // Predicated region
        $region45: #{tpu_custom_call.1} parent=31 // pred_check
          %p1689 = pneg %p107
        $region46: #{tpu_custom_call.1} parent=31 // pred_check_branch
          %1691 = sbr.rel (%p1689) target = $region48
        $region47: #{tpu_custom_call.1} parent=31 // pred_region
          %s1693 = ssub.s32 512, 512
          %1694 = vsyncadd %s1685, %s1693
          %s1695 = smul.addr %s21, 4
          %s1696 = smul.addr %s1695, 128
          %s1697 = scalar_lea.hbm %s3, %s1696
          %s1699 = sshll.u32 %s1688, 4
          %s1700 = int_to_ptr.vmem [resolvable:$true] %s1699
          %1702 = dma.vmem_to_hbm [thread:$0]  %s1700, 512, %s1697, %s1685
        $region48: #{tpu_custom_call.1} parent=31 // pred_fallthru
          _
      $region32: #{tpu_custom_call.1} parent=5 // pred_fallthru
        _
      %p1703 = scmp.le.s32.totalorder 2, %s16
      // Predicated region
      $region49: #{tpu_custom_call.1} parent=5 // pred_check
        %p1704 = pneg %p1703
      $region50: #{tpu_custom_call.1} parent=5 // pred_check_branch
        %1706 = sbr.rel (%p1704) target = $region52
      $region51: #{tpu_custom_call.1} parent=5 // pred_region
        %s1707 = ssub.s32 %s16, 2
        // Predicated region
        $region53: #{tpu_custom_call.1} parent=51 // pred_check
          %p1708 = pneg %p113
        $region54: #{tpu_custom_call.1} parent=51 // pred_check_branch
          %1710 = sbr.rel (%p1708) target = $region56
        $region55: #{tpu_custom_call.1} parent=51 // pred_region
          %s1711 = sand.u32 %s98, 1
          %s1712 = scalar_lea.sflag [#allocation5], %s1711
          %s1713 = sand.u32 %s98, 1
          %s1714 = smul.addr %s1713, 32
          %s1715 = scalar_lea.vmem [#allocation9], %s1714
          %1716 = dma.done %s1712, 512
        $region56: #{tpu_custom_call.1} parent=51 // pred_fallthru
          _
      $region52: #{tpu_custom_call.1} parent=5 // pred_fallthru
        _
    $region6: #{tpu_custom_call.1} parent=1 // loop_footer
      %s20 = sadd.s32 1, %s16
    $region7: #{tpu_custom_call.1} parent=1 // loop_footer_branch
      %15 = sbr.rel target = $region3
    $region8: #{tpu_custom_call.1} parent=1 // loop_exit
      _
    %1717 = vsyncpa [#allocation4], 1
    %s1718 = scalar_lea.sflag [#allocation4], 1
    %1719 = vsyncpa %s1718, 1
    %1720 = vsyncpa [#allocation7], 1
    %1721 = vsyncpa [#allocation5], 1
    %s1722 = scalar_lea.sflag [#allocation5], 1
    %1723 = vsyncpa %s1722, 1

</llo_original>
